<compile_context>
chip_gen: v7x
topology: tpu7x:2x2x1
jax: 0.10.0
libtpu: 0.0.40
codegen_flags: <defaults>
</compile_context>

<pallas_src>
import functools

import jax
import jax.numpy as jnp
from jax.experimental import pallas as pl
from jax.experimental.pallas import tpu as pltpu


# ----------------------------------------------------------------------------
# Fused PAM attention kernel
# ----------------------------------------------------------------------------
def _pam_attention_kernel(x_ref,            # (HW, C)   full per-batch activations
                          wq_ref, bq_ref,   # (C, C8), (1, C8)
                          wk_ref, bk_ref,   # (C, C8), (1, C8)
                          wv_ref, bv_ref,   # (C, C),  (1, C)
                          gamma_ref,        # (1, 1)
                          o_ref,            # (TQ, C)  query-tile output
                          k_sc, v_sc,       # VMEM scratch: (HW, C8), (HW, C)
                          *, tq):
    qi = pl.program_id(1)

    # K / V are per-batch: compute them once (query-tile 0) and reuse.
    @pl.when(qi == 0)
    def _():
        x_all = x_ref[...]
        k_sc[...] = (jnp.dot(x_all, wk_ref[...],
                             preferred_element_type=jnp.float32)
                     + bk_ref[...])
        v_sc[...] = (jnp.dot(x_all, wv_ref[...],
                             preferred_element_type=jnp.float32)
                     + bv_ref[...])

    # Query rows for this tile, sliced from the resident x block.
    row0 = pl.multiple_of(qi * tq, tq)
    xq = x_ref[pl.ds(row0, tq), :]                                   # (TQ, C)
    q = (jnp.dot(xq, wq_ref[...], preferred_element_type=jnp.float32)
         + bq_ref[...])                                              # (TQ, C8)

    # energy[i, j] = q_i . k_j   (contract the C8 axis of both operands)
    energy = jax.lax.dot_general(
        q, k_sc[...], (((1,), (1,)), ((), ())),
        preferred_element_type=jnp.float32)                          # (TQ, HW)

    # softmax over the key axis (exact: exp(x - max) / sum)
    m = jnp.max(energy, axis=-1, keepdims=True)
    p = jnp.exp(energy - m)
    attn = p / jnp.sum(p, axis=-1, keepdims=True)                    # (TQ, HW)

    out = jnp.dot(attn, v_sc[...], preferred_element_type=jnp.float32)  # (TQ, C)

    o_ref[...] = (gamma_ref[...] * out + xq).astype(o_ref.dtype)


def _choose_tq(hw, max_tile=128):
    """Largest query tile <= max_tile that divides HW (sublane-friendly)."""
    t = min(max_tile, hw)
    while t > 8 and hw % t != 0:
        t //= 2
    if hw % t != 0:
        t = hw                      # single full-extent tile is always legal
    return t


def pam_forward(params, x):
    """PAM_Module forward.  x: (B, C, H, W) float32 -> (B, C, H, W)."""
    B, C, H, W = x.shape
    assert C % 8 == 0, "in_dim must be divisible by 8 (query/key = C//8)"
    c8 = C // 8
    HW = H * W

    # NCHW -> (B, HW, C) channels-last for matmul-friendly layout.
    x_cl = jnp.transpose(x.reshape(B, C, HW), (0, 2, 1))

    tq = _choose_tq(HW)
    n_q = HW // tq

    kernel = functools.partial(_pam_attention_kernel, tq=tq)
    out_cl = pl.pallas_call(
        kernel,
        out_shape=jax.ShapeDtypeStruct((B, HW, C), jnp.float32),
        grid_spec=pltpu.PrefetchScalarGridSpec(
            num_scalar_prefetch=0,
            grid=(B, n_q),
            in_specs=[
                # full per-batch activation block (constant over the qi axis,
                # so it is only DMA'd once per batch element)
                pl.BlockSpec((None, HW, C), lambda b, qi: (b, 0, 0)),
                pl.BlockSpec((C, c8), lambda b, qi: (0, 0)),   # wq
                pl.BlockSpec((1, c8), lambda b, qi: (0, 0)),   # bq
                pl.BlockSpec((C, c8), lambda b, qi: (0, 0)),   # wk
                pl.BlockSpec((1, c8), lambda b, qi: (0, 0)),   # bk
                pl.BlockSpec((C, C), lambda b, qi: (0, 0)),    # wv
                pl.BlockSpec((1, C), lambda b, qi: (0, 0)),    # bv
                pl.BlockSpec((1, 1), lambda b, qi: (0, 0)),    # gamma
            ],
            out_specs=pl.BlockSpec((None, tq, C), lambda b, qi: (b, qi, 0)),
            scratch_shapes=[
                pltpu.VMEM((HW, c8), jnp.float32),   # K
                pltpu.VMEM((HW, C), jnp.float32),    # V
            ],
        ),
        compiler_params=pltpu.CompilerParams(
            dimension_semantics=("parallel", "arbitrary")),
    )(x_cl, params['wq'], params['bq'], params['wk'], params['bk'],
      params['wv'], params['bv'], params['gamma'])

    # (B, HW, C) -> (B, C, H, W)
    return jnp.transpose(out_cl, (0, 2, 1)).reshape(B, C, H, W)


# ----------------------------------------------------------------------------
# Parameter init (matches PyTorch Conv2d 1x1 shapes; gamma is a learnable
# scalar — the module initializes it to 0, we use a nonzero value so the
# attention path is numerically exercised)
# ----------------------------------------------------------------------------
def init_params(key, in_dim, gamma=0.25):
    c8 = in_dim // 8
    ks = jax.random.split(key, 6)

    def conv1x1(kw, kb, cin, cout):
        bound = 1.0 / (cin ** 0.5)        # PyTorch default Conv2d init range
        w = jax.random.uniform(kw, (cin, cout), jnp.float32, -bound, bound)
        b = jax.random.uniform(kb, (1, cout), jnp.float32, -bound, bound)
        return w, b

    wq, bq = conv1x1(ks[0], ks[1], in_dim, c8)
    wk, bk = conv1x1(ks[2], ks[3], in_dim, c8)
    wv, bv = conv1x1(ks[4], ks[5], in_dim, in_dim)
    return dict(wq=wq, bq=bq, wk=wk, bk=bk, wv=wv, bv=bv,
                gamma=jnp.full((1, 1), gamma, jnp.float32))


# ----------------------------------------------------------------------------
# Pure-JAX reference (no Pallas) for correctness checking
# ----------------------------------------------------------------------------
def pam_reference(params, x):
    B, C, H, W = x.shape
    HW = H * W
    hi = jax.lax.Precision.HIGHEST
    xf = jnp.transpose(x.reshape(B, C, HW), (0, 2, 1))               # (B,HW,C)
    q = jnp.einsum('bnc,cd->bnd', xf, params['wq'], precision=hi) + params['bq'][0]
    k = jnp.einsum('bnc,cd->bnd', xf, params['wk'], precision=hi) + params['bk'][0]
    v = jnp.einsum('bnc,cd->bnd', xf, params['wv'], precision=hi) + params['bv'][0]
    energy = jnp.einsum('bid,bjd->bij', q, k, precision=hi)
    attn = jax.nn.softmax(energy, axis=-1)
    out = jnp.einsum('bij,bjc->bic', attn, v, precision=hi)
    out = params['gamma'][0, 0] * out + xf
    return jnp.transpose(out, (0, 2, 1)).reshape(B, C, H, W)


# ----------------------------------------------------------------------------
if __name__ == "__main__":
    key = jax.random.PRNGKey(0)
    B, C, H, W = 2, 64, 16, 16            # in_dim=64 -> query/key dim 8
    kx, kp = jax.random.split(key)
    x = jax.random.normal(kx, (B, C, H, W), jnp.float32)
    params = init_params(kp, C)

    fwd = jax.jit(pam_forward)
    y = fwd(params, x)
    jax.block_until_ready(y)

    assert y.shape == (B, C, H, W), y.shape
    assert bool(jnp.all(jnp.isfinite(y)))

    y_ref = pam_reference(params, x)
    max_err = float(jnp.max(jnp.abs(y - y_ref)))
    assert max_err < 1e-2, f"max abs err vs reference: {max_err}"

    print("KERNEL_OK")
</pallas_src>

<mosaic_0001>
module attributes {stable_mosaic.version = 11 : i64} {
  func.func @_pam_attention_kernel(%arg0: i32, %arg1: i32, %arg2: memref<1x256x64xf32, #tpu.memory_space<vmem>>, %arg3: memref<64x8xf32, #tpu.memory_space<vmem>>, %arg4: memref<1x8xf32, #tpu.memory_space<vmem>>, %arg5: memref<64x8xf32, #tpu.memory_space<vmem>>, %arg6: memref<1x8xf32, #tpu.memory_space<vmem>>, %arg7: memref<64x64xf32, #tpu.memory_space<vmem>>, %arg8: memref<1x64xf32, #tpu.memory_space<vmem>>, %arg9: memref<1x1xf32, #tpu.memory_space<vmem>>, %arg10: memref<1x128x64xf32, #tpu.memory_space<vmem>>, %arg11: memref<256x8xf32, #tpu.memory_space<vmem>>, %arg12: memref<256x64xf32, #tpu.memory_space<vmem>>) attributes {dimension_semantics = [#tpu.dimension_semantics<parallel>, #tpu.dimension_semantics<arbitrary>], iteration_bounds = array<i64: 2, 2>, scalar_prefetch = 0 : i64, scratch_operands = 2 : i64, tpu.core_type = #tpu.core_type<tc>, window_params = [{transform_indices = @transform_0, window_bounds = array<i64: 1, 256, 64>}, {pipeline_mode = #tpu.pipeline_mode<synchronous>, transform_indices = @transform_1, window_bounds = array<i64: 64, 8>}, {pipeline_mode = #tpu.pipeline_mode<synchronous>, transform_indices = @transform_2, window_bounds = array<i64: 1, 8>}, {pipeline_mode = #tpu.pipeline_mode<synchronous>, transform_indices = @transform_3, window_bounds = array<i64: 64, 8>}, {pipeline_mode = #tpu.pipeline_mode<synchronous>, transform_indices = @transform_4, window_bounds = array<i64: 1, 8>}, {pipeline_mode = #tpu.pipeline_mode<synchronous>, transform_indices = @transform_5, window_bounds = array<i64: 64, 64>}, {pipeline_mode = #tpu.pipeline_mode<synchronous>, transform_indices = @transform_6, window_bounds = array<i64: 1, 64>}, {pipeline_mode = #tpu.pipeline_mode<synchronous>, transform_indices = @transform_7, window_bounds = array<i64: 1, 1>}, {transform_indices = @transform_8, window_bounds = array<i64: 1, 128, 64>}]} {
    %c0_i32 = arith.constant 0 : i32
    %0 = arith.cmpi eq, %arg1, %c0_i32 : i32
    %1 = arith.extui %0 : i1 to i32
    %c0_i32_0 = arith.constant 0 : i32
    %2 = arith.cmpi ne, %1, %c0_i32_0 : i32
    scf.if %2 {
      %c0_19 = arith.constant 0 : index
      %c0_20 = arith.constant 0 : index
      %c0_21 = arith.constant 0 : index
      %33 = vector.load %arg2[%c0_19, %c0_20, %c0_21] : memref<1x256x64xf32, #tpu.memory_space<vmem>>, vector<1x256x64xf32>
      %34 = vector.shape_cast %33 : vector<1x256x64xf32> to vector<256x64xf32>
      %c0_22 = arith.constant 0 : index
      %c0_23 = arith.constant 0 : index
      %35 = vector.load %arg5[%c0_22, %c0_23] : memref<64x8xf32, #tpu.memory_space<vmem>>, vector<64x8xf32>
      %cst_24 = arith.constant dense<0.000000e+00> : vector<256x8xf32>
      %36 = tpu.matmul %34, %35, %cst_24 {dimension_numbers = #tpu.dot_dimension_numbers<[1], [0], [0], [1], [0, 0, 1, 1], [], []>} : vector<256x64xf32>, vector<64x8xf32>, vector<256x8xf32> -> vector<256x8xf32>
      %c0_25 = arith.constant 0 : index
      %c0_26 = arith.constant 0 : index
      %37 = vector.load %arg6[%c0_25, %c0_26] : memref<1x8xf32, #tpu.memory_space<vmem>>, vector<1x8xf32>
      %38 = vector.broadcast %37 : vector<1x8xf32> to vector<256x8xf32>
      %39 = arith.addf %36, %38 : vector<256x8xf32>
      %c0_27 = arith.constant 0 : index
      %c0_28 = arith.constant 0 : index
      %40 = vector.load %arg11[%c0_27, %c0_28] : memref<256x8xf32, #tpu.memory_space<vmem>>, vector<256x8xf32>
      tpu.vector_store %arg11[%c0_27, %c0_28], %39 {strides = array<i32>} : memref<256x8xf32, #tpu.memory_space<vmem>>, vector<256x8xf32>,
      %c0_29 = arith.constant 0 : index
      %c0_30 = arith.constant 0 : index
      %41 = vector.load %arg7[%c0_29, %c0_30] : memref<64x64xf32, #tpu.memory_space<vmem>>, vector<64x64xf32>
      %cst_31 = arith.constant dense<0.000000e+00> : vector<256x64xf32>
      %42 = tpu.matmul %34, %41, %cst_31 {dimension_numbers = #tpu.dot_dimension_numbers<[1], [0], [0], [1], [0, 0, 1, 1], [], []>} : vector<256x64xf32>, vector<64x64xf32>, vector<256x64xf32> -> vector<256x64xf32>
      %c0_32 = arith.constant 0 : index
      %c0_33 = arith.constant 0 : index
      %43 = vector.load %arg8[%c0_32, %c0_33] : memref<1x64xf32, #tpu.memory_space<vmem>>, vector<1x64xf32>
      %44 = vector.broadcast %43 : vector<1x64xf32> to vector<256x64xf32>
      %45 = arith.addf %42, %44 : vector<256x64xf32>
      %c0_34 = arith.constant 0 : index
      %c0_35 = arith.constant 0 : index
      %46 = vector.load %arg12[%c0_34, %c0_35] : memref<256x64xf32, #tpu.memory_space<vmem>>, vector<256x64xf32>
      tpu.vector_store %arg12[%c0_34, %c0_35], %45 {strides = array<i32>} : memref<256x64xf32, #tpu.memory_space<vmem>>, vector<256x64xf32>,
    } else {
    }
    %c128_i32 = arith.constant 128 : i32
    %3 = arith.muli %arg1, %c128_i32 : i32
    %4 = tpu.assume_multiple %3, 128 : i32
    %c0 = arith.constant 0 : index
    %5 = arith.index_cast %4 : i32 to index
    %c0_1 = arith.constant 0 : index
    %6 = vector.load %arg2[%c0, %5, %c0_1] : memref<1x256x64xf32, #tpu.memory_space<vmem>>, vector<1x128x64xf32>
    %7 = vector.shape_cast %6 : vector<1x128x64xf32> to vector<128x64xf32>
    %c0_2 = arith.constant 0 : index
    %c0_3 = arith.constant 0 : index
    %8 = vector.load %arg3[%c0_2, %c0_3] : memref<64x8xf32, #tpu.memory_space<vmem>>, vector<64x8xf32>
    %cst = arith.constant dense<0.000000e+00> : vector<128x8xf32>
    %9 = tpu.matmul %7, %8, %cst {dimension_numbers = #tpu.dot_dimension_numbers<[1], [0], [0], [1], [0, 0, 1, 1], [], []>} : vector<128x64xf32>, vector<64x8xf32>, vector<128x8xf32> -> vector<128x8xf32>
    %c0_4 = arith.constant 0 : index
    %c0_5 = arith.constant 0 : index
    %10 = vector.load %arg4[%c0_4, %c0_5] : memref<1x8xf32, #tpu.memory_space<vmem>>, vector<1x8xf32>
    %11 = vector.broadcast %10 : vector<1x8xf32> to vector<128x8xf32>
    %12 = arith.addf %9, %11 : vector<128x8xf32>
    %c0_6 = arith.constant 0 : index
    %c0_7 = arith.constant 0 : index
    %13 = vector.load %arg11[%c0_6, %c0_7] : memref<256x8xf32, #tpu.memory_space<vmem>>, vector<256x8xf32>
    %cst_8 = arith.constant dense<0.000000e+00> : vector<128x256xf32>
    %14 = tpu.matmul %12, %13, %cst_8 {dimension_numbers = #tpu.dot_dimension_numbers<[1], [1], [0], [0], [0, 0, 1, 0], [], []>} : vector<128x8xf32>, vector<256x8xf32>, vector<128x256xf32> -> vector<128x256xf32>
    %cst_9 = arith.constant dense<0xFF800000> : vector<128xf32>
    %15 = vector.multi_reduction <maximumf>, %14, %cst_9 [1] : vector<128x256xf32> to vector<128xf32>
    %16 = vector.shape_cast %15 : vector<128xf32> to vector<128x1xf32>
    %17 = vector.broadcast %16 : vector<128x1xf32> to vector<128x256xf32>
    %18 = arith.subf %14, %17 : vector<128x256xf32>
    %19 = math.exp %18 : vector<128x256xf32>
    %cst_10 = arith.constant dense<0.000000e+00> : vector<128xf32>
    %20 = vector.multi_reduction <add>, %19, %cst_10 [1] : vector<128x256xf32> to vector<128xf32>
    %21 = vector.shape_cast %20 : vector<128xf32> to vector<128x1xf32>
    %22 = vector.broadcast %21 : vector<128x1xf32> to vector<128x256xf32>
    %23 = arith.divf %19, %22 : vector<128x256xf32>
    %c0_11 = arith.constant 0 : index
    %c0_12 = arith.constant 0 : index
    %24 = vector.load %arg12[%c0_11, %c0_12] : memref<256x64xf32, #tpu.memory_space<vmem>>, vector<256x64xf32>
    %cst_13 = arith.constant dense<0.000000e+00> : vector<128x64xf32>
    %25 = tpu.matmul %23, %24, %cst_13 {dimension_numbers = #tpu.dot_dimension_numbers<[1], [0], [0], [1], [0, 0, 1, 1], [], []>} : vector<128x256xf32>, vector<256x64xf32>, vector<128x64xf32> -> vector<128x64xf32>
    %c0_14 = arith.constant 0 : index
    %c0_15 = arith.constant 0 : index
    %26 = vector.load %arg9[%c0_14, %c0_15] : memref<1x1xf32, #tpu.memory_space<vmem>>, vector<1x1xf32>
    %27 = vector.broadcast %26 : vector<1x1xf32> to vector<128x64xf32>
    %28 = arith.mulf %27, %25 : vector<128x64xf32>
    %29 = arith.addf %28, %7 : vector<128x64xf32>
    %c0_16 = arith.constant 0 : index
    %c0_17 = arith.constant 0 : index
    %c0_18 = arith.constant 0 : index
    %30 = vector.load %arg10[%c0_16, %c0_17, %c0_18] : memref<1x128x64xf32, #tpu.memory_space<vmem>>, vector<1x128x64xf32>
    %31 = vector.shape_cast %30 : vector<1x128x64xf32> to vector<128x64xf32>
    %32 = vector.shape_cast %29 : vector<128x64xf32> to vector<1x128x64xf32>
    tpu.vector_store %arg10[%c0_16, %c0_17, %c0_18], %32 {strides = array<i32>} : memref<1x128x64xf32, #tpu.memory_space<vmem>>, vector<1x128x64xf32>,
    return
  }
  func.func @transform_0(%arg0: i32, %arg1: i32) -> (i32, i32, i32) {
    %c0_i32 = arith.constant 0 : i32
    %c0_i32_0 = arith.constant 0 : i32
    %c0_i32_1 = arith.constant 0 : i32
    return %arg0, %c0_i32, %c0_i32_0 : i32, i32, i32
  }
  func.func @transform_1(%arg0: i32, %arg1: i32) -> (i32, i32) {
    %c0_i32 = arith.constant 0 : i32
    %c0_i32_0 = arith.constant 0 : i32
    %c0_i32_1 = arith.constant 0 : i32
    return %c0_i32, %c0_i32_0 : i32, i32
  }
  func.func @transform_2(%arg0: i32, %arg1: i32) -> (i32, i32) {
    %c0_i32 = arith.constant 0 : i32
    %c0_i32_0 = arith.constant 0 : i32
    %c0_i32_1 = arith.constant 0 : i32
    return %c0_i32, %c0_i32_0 : i32, i32
  }
  func.func @transform_3(%arg0: i32, %arg1: i32) -> (i32, i32) {
    %c0_i32 = arith.constant 0 : i32
    %c0_i32_0 = arith.constant 0 : i32
    %c0_i32_1 = arith.constant 0 : i32
    return %c0_i32, %c0_i32_0 : i32, i32
  }
  func.func @transform_4(%arg0: i32, %arg1: i32) -> (i32, i32) {
    %c0_i32 = arith.constant 0 : i32
    %c0_i32_0 = arith.constant 0 : i32
    %c0_i32_1 = arith.constant 0 : i32
    return %c0_i32, %c0_i32_0 : i32, i32
  }
  func.func @transform_5(%arg0: i32, %arg1: i32) -> (i32, i32) {
    %c0_i32 = arith.constant 0 : i32
    %c0_i32_0 = arith.constant 0 : i32
    %c0_i32_1 = arith.constant 0 : i32
    return %c0_i32, %c0_i32_0 : i32, i32
  }
  func.func @transform_6(%arg0: i32, %arg1: i32) -> (i32, i32) {
    %c0_i32 = arith.constant 0 : i32
    %c0_i32_0 = arith.constant 0 : i32
    %c0_i32_1 = arith.constant 0 : i32
    return %c0_i32, %c0_i32_0 : i32, i32
  }
  func.func @transform_7(%arg0: i32, %arg1: i32) -> (i32, i32) {
    %c0_i32 = arith.constant 0 : i32
    %c0_i32_0 = arith.constant 0 : i32
    %c0_i32_1 = arith.constant 0 : i32
    return %c0_i32, %c0_i32_0 : i32, i32
  }
  func.func @transform_8(%arg0: i32, %arg1: i32) -> (i32, i32, i32) {
    %c0_i32 = arith.constant 0 : i32
    %c0_i32_0 = arith.constant 0 : i32
    return %arg0, %arg1, %c0_i32 : i32, i32, i32
  }
}

</mosaic_0001>

<llo_original>
// kernel: pam_forward.1
$region0: #{pam_forward.1}
  #allocation0 [shape = 'u32[]', space=smem, size = 0x4, offset = 0x4, fixed_abs, tag = 'smem constant byte address 0x4 - core index']
  #allocation1 [shape = 'u32[144,128]{1,0:T(1,128)}', space=vmem, size = 0x12000, scoped, tag = 'internal scratch']
  #allocation2 [shape = 'f32[256,8]{1,0:T(8,128)}', space=vmem, size = 0x20000, scoped, tag = 'scratch operand']
  #allocation3 [shape = 'f32[256,64]{1,0:T(8,128)}', space=vmem, size = 0x20000, scoped, tag = 'scratch operand']
  #allocation4 [shape = 'f32[1,1]{1,0:T(1,128)S(1)}', space=vmem, size = 0x200, scoped, tag = 'scoped memory for pam_forward.1']
  %s0 = inlined_call_operand.hbm [shape: f32[2,256,64], index: 0, kind: input, shape index: {}]
  %s1 = inlined_call_operand.vmem [shape: f32[64,8], index: 1, kind: input, shape index: {}]
  %s2 = inlined_call_operand.vmem [shape: f32[1,8], index: 2, kind: input, shape index: {}]
  %s3 = inlined_call_operand.vmem [shape: f32[64,8], index: 3, kind: input, shape index: {}]
  %s4 = inlined_call_operand.vmem [shape: f32[1,8], index: 4, kind: input, shape index: {}]
  %s5 = inlined_call_operand.vmem [shape: f32[64,64], index: 5, kind: input, shape index: {}]
  %s6 = inlined_call_operand.vmem [shape: f32[1,64], index: 6, kind: input, shape index: {}]
  %s7 = inlined_call_operand.<no memory space> [shape: f32[1,1], index: 7, kind: input, shape index: {}]
  %s8 = inlined_call_operand.hbm [shape: f32[2,256,64], index: 8, kind: output, shape index: {}]
  %s9 = sld [smem:[#allocation0]]
  $region73: #{pam_forward.1} parent=0
    _
  %s11 = ssub.s32 1, %s9
  %s12 = scalar_select 0, %s11, %s9
  %v13 = vstv %s7
  %14 = vst [vmem:[#allocation4] sm:$0x1] %v13
  $region1: #{pam_forward.1} parent=0
    #allocation5 [shape = 'u8[262144]{0}', space=vmem, size = 0x40000, scoped, tag = 'input window, operand 0']
    #allocation6 [shape = 's32[2]{0}', space=sflag, size = 0x8, scoped, tag = 'scoped memory for pam_forward.1']
    #allocation7 [shape = 's32[2]{0}', space=sflag, size = 0x8, scoped, tag = 'scoped memory for pam_forward.1']
    #allocation8 [shape = 'u8[131072]{0}', space=vmem, size = 0x20000, scoped, tag = 'output window, operand 0']
    %15 = vsyncpa [#allocation6], 0
    %s16 = scalar_lea.sflag [#allocation6], 1
    %17 = vsyncpa %s16, 0
    %18 = vsyncpa [#allocation7], 0
    %s19 = scalar_lea.sflag [#allocation7], 1
    %20 = vsyncpa %s19, 0
    loop: start=0, step=1, limit=6
    $region2: #{pam_forward.1} parent=1 // loop_pre_header
      _
    $region3: #{pam_forward.1} parent=1 // loop_header
      %s22 = sphi 0, %s26
      %p23 = scmp.ge.s32.totalorder %s22, 6
      %s29 = sphi 0, %s41
      %s30 = sphi 0, %s37
      %s31 = sphi 0, %s29
      %s32 = sphi 0, %s30
      %s33 = sphi 0, %s31
      %s34 = sphi 0, %s32
      %s44 = sphi 0, %s46
      %s47 = sphi 0, %s44
      %s48 = sphi 0, %s47
      %s64 = sphi 0, %s48
      %s68 = sphi 0, %s68
      %s70 = sphi 0, %s68
      %s71 = sphi 0, %s70
      %s85 = sphi 0, %s71
      %s89 = sphi 0, %s89
      %s91 = sphi 0, %s89
      %s92 = sphi 0, %s91
      %s106 = sphi 0, %s92
      %s110 = sphi 0, %s110
      %s112 = sphi 0, %s110
      %s113 = sphi 0, %s112
      %s127 = sphi 0, %s113
      %s131 = sphi 0, %s131
      %s133 = sphi 0, %s131
      %s134 = sphi 0, %s133
      %s148 = sphi 0, %s134
      %s152 = sphi 0, %s152
      %s154 = sphi 0, %s152
      %s155 = sphi 0, %s154
      %s169 = sphi 0, %s155
      %s173 = sphi 0, %s173
      %s175 = sphi 0, %s173
      %s176 = sphi 0, %s175
      %s190 = sphi 0, %s176
      %s194 = sphi 0, %s194
      %s196 = sphi 0, %s194
      %s197 = sphi 0, %s196
      %s211 = sphi 0, %s197
      %s219 = sphi 0, %s221
      %s222 = sphi 0, %s219
      %s223 = sphi 0, %s222
      %s239 = sphi 0, %s223
    $region4: #{pam_forward.1} parent=1 // loop_header_branch
      %25 = sbr.rel (%p23) target = $region8
    $region5: #{pam_forward.1} parent=1 // loop_body
      %s27 = ssub.s32 %s22, 1
      %s28 = ssub.s32 %s22, 2
      %s35 = sadd.s32 1, %s30
      %p36 = scmp.ge.s32.totalorder %s35, 2
      %s37 = scalar_select %p36, 0, %s35
      %s38 = sadd.s32 1, %s29
      %s39 = scalar_select %p36, %s38, %s29
      %p40 = scmp.ge.s32.totalorder %s39, 2
      %s41 = scalar_select %p40, 0, %s39
      %s42 = ssub.s32 %s29, %s41
      %p43 = scmp.eq.s32.totalorder %s42, 0
      %s45 = sadd.s32 %s44, 1
      %s46 = scalar_select %p43, %s44, %s45
      %p49 = pneg %p43
      %p50 = scmp.eq.s32.totalorder %s22, 3
      %p51 = por %p49, %p50
      %p52 = scmp.ne.s32.totalorder %s44, %s47
      %p53 = scmp.eq.s32.totalorder %s22, 0
      %p54 = por %p52, %p53
      %p55 = scmp.ne.s32.totalorder %s44, %s47
      %p56 = scmp.eq.s32.totalorder %s27, 3
      %p57 = por %p55, %p56
      %p58 = scmp.ne.s32.totalorder %s47, %s48
      %p59 = scmp.eq.s32.totalorder %s27, 0
      %p60 = por %p58, %p59
      %p61 = scmp.ne.s32.totalorder %s47, %s48
      %p62 = scmp.eq.s32.totalorder %s28, 3
      %p63 = por %p61, %p62
      %p65 = scmp.ne.s32.totalorder %s48, %s64
      %p66 = scmp.eq.s32.totalorder %s28, 0
      %p67 = por %p65, %p66
      %s69 = sadd.s32 %s68, 1
      %p72 = scmp.eq.s32.totalorder %s22, 3
      %p73 = scmp.ne.s32.totalorder %s68, %s70
      %p74 = scmp.eq.s32.totalorder %s22, 0
      %p75 = por %p73, %p74
      %p76 = scmp.ne.s32.totalorder %s68, %s70
      %p77 = scmp.eq.s32.totalorder %s27, 3
      %p78 = por %p76, %p77
      %p79 = scmp.ne.s32.totalorder %s70, %s71
      %p80 = scmp.eq.s32.totalorder %s27, 0
      %p81 = por %p79, %p80
      %p82 = scmp.ne.s32.totalorder %s70, %s71
      %p83 = scmp.eq.s32.totalorder %s28, 3
      %p84 = por %p82, %p83
      %p86 = scmp.ne.s32.totalorder %s71, %s85
      %p87 = scmp.eq.s32.totalorder %s28, 0
      %p88 = por %p86, %p87
      %s90 = sadd.s32 %s89, 1
      %p93 = scmp.eq.s32.totalorder %s22, 3
      %p94 = scmp.ne.s32.totalorder %s89, %s91
      %p95 = scmp.eq.s32.totalorder %s22, 0
      %p96 = por %p94, %p95
      %p97 = scmp.ne.s32.totalorder %s89, %s91
      %p98 = scmp.eq.s32.totalorder %s27, 3
      %p99 = por %p97, %p98
      %p100 = scmp.ne.s32.totalorder %s91, %s92
      %p101 = scmp.eq.s32.totalorder %s27, 0
      %p102 = por %p100, %p101
      %p103 = scmp.ne.s32.totalorder %s91, %s92
      %p104 = scmp.eq.s32.totalorder %s28, 3
      %p105 = por %p103, %p104
      %p107 = scmp.ne.s32.totalorder %s92, %s106
      %p108 = scmp.eq.s32.totalorder %s28, 0
      %p109 = por %p107, %p108
      %s111 = sadd.s32 %s110, 1
      %p114 = scmp.eq.s32.totalorder %s22, 3
      %p115 = scmp.ne.s32.totalorder %s110, %s112
      %p116 = scmp.eq.s32.totalorder %s22, 0
      %p117 = por %p115, %p116
      %p118 = scmp.ne.s32.totalorder %s110, %s112
      %p119 = scmp.eq.s32.totalorder %s27, 3
      %p120 = por %p118, %p119
      %p121 = scmp.ne.s32.totalorder %s112, %s113
      %p122 = scmp.eq.s32.totalorder %s27, 0
      %p123 = por %p121, %p122
      %p124 = scmp.ne.s32.totalorder %s112, %s113
      %p125 = scmp.eq.s32.totalorder %s28, 3
      %p126 = por %p124, %p125
      %p128 = scmp.ne.s32.totalorder %s113, %s127
      %p129 = scmp.eq.s32.totalorder %s28, 0
      %p130 = por %p128, %p129
      %s132 = sadd.s32 %s131, 1
      %p135 = scmp.eq.s32.totalorder %s22, 3
      %p136 = scmp.ne.s32.totalorder %s131, %s133
      %p137 = scmp.eq.s32.totalorder %s22, 0
      %p138 = por %p136, %p137
      %p139 = scmp.ne.s32.totalorder %s131, %s133
      %p140 = scmp.eq.s32.totalorder %s27, 3
      %p141 = por %p139, %p140
      %p142 = scmp.ne.s32.totalorder %s133, %s134
      %p143 = scmp.eq.s32.totalorder %s27, 0
      %p144 = por %p142, %p143
      %p145 = scmp.ne.s32.totalorder %s133, %s134
      %p146 = scmp.eq.s32.totalorder %s28, 3
      %p147 = por %p145, %p146
      %p149 = scmp.ne.s32.totalorder %s134, %s148
      %p150 = scmp.eq.s32.totalorder %s28, 0
      %p151 = por %p149, %p150
      %s153 = sadd.s32 %s152, 1
      %p156 = scmp.eq.s32.totalorder %s22, 3
      %p157 = scmp.ne.s32.totalorder %s152, %s154
      %p158 = scmp.eq.s32.totalorder %s22, 0
      %p159 = por %p157, %p158
      %p160 = scmp.ne.s32.totalorder %s152, %s154
      %p161 = scmp.eq.s32.totalorder %s27, 3
      %p162 = por %p160, %p161
      %p163 = scmp.ne.s32.totalorder %s154, %s155
      %p164 = scmp.eq.s32.totalorder %s27, 0
      %p165 = por %p163, %p164
      %p166 = scmp.ne.s32.totalorder %s154, %s155
      %p167 = scmp.eq.s32.totalorder %s28, 3
      %p168 = por %p166, %p167
      %p170 = scmp.ne.s32.totalorder %s155, %s169
      %p171 = scmp.eq.s32.totalorder %s28, 0
      %p172 = por %p170, %p171
      %s174 = sadd.s32 %s173, 1
      %p177 = scmp.eq.s32.totalorder %s22, 3
      %p178 = scmp.ne.s32.totalorder %s173, %s175
      %p179 = scmp.eq.s32.totalorder %s22, 0
      %p180 = por %p178, %p179
      %p181 = scmp.ne.s32.totalorder %s173, %s175
      %p182 = scmp.eq.s32.totalorder %s27, 3
      %p183 = por %p181, %p182
      %p184 = scmp.ne.s32.totalorder %s175, %s176
      %p185 = scmp.eq.s32.totalorder %s27, 0
      %p186 = por %p184, %p185
      %p187 = scmp.ne.s32.totalorder %s175, %s176
      %p188 = scmp.eq.s32.totalorder %s28, 3
      %p189 = por %p187, %p188
      %p191 = scmp.ne.s32.totalorder %s176, %s190
      %p192 = scmp.eq.s32.totalorder %s28, 0
      %p193 = por %p191, %p192
      %s195 = sadd.s32 %s194, 1
      %p198 = scmp.eq.s32.totalorder %s22, 3
      %p199 = scmp.ne.s32.totalorder %s194, %s196
      %p200 = scmp.eq.s32.totalorder %s22, 0
      %p201 = por %p199, %p200
      %p202 = scmp.ne.s32.totalorder %s194, %s196
      %p203 = scmp.eq.s32.totalorder %s27, 3
      %p204 = por %p202, %p203
      %p205 = scmp.ne.s32.totalorder %s196, %s197
      %p206 = scmp.eq.s32.totalorder %s27, 0
      %p207 = por %p205, %p206
      %p208 = scmp.ne.s32.totalorder %s196, %s197
      %p209 = scmp.eq.s32.totalorder %s28, 3
      %p210 = por %p208, %p209
      %p212 = scmp.ne.s32.totalorder %s197, %s211
      %p213 = scmp.eq.s32.totalorder %s28, 0
      %p214 = por %p212, %p213
      %s215 = ssub.s32 %s29, %s41
      %s216 = ssub.s32 %s30, %s37
      %s217 = sor.u32 %s215, %s216
      %p218 = scmp.eq.s32.totalorder %s217, 0
      %s220 = sadd.s32 %s219, 1
      %s221 = scalar_select %p218, %s219, %s220
      %p224 = pneg %p218
      %p225 = scmp.eq.s32.totalorder %s22, 3
      %p226 = por %p224, %p225
      %p227 = scmp.ne.s32.totalorder %s219, %s222
      %p228 = scmp.eq.s32.totalorder %s22, 0
      %p229 = por %p227, %p228
      %p230 = scmp.ne.s32.totalorder %s219, %s222
      %p231 = scmp.eq.s32.totalorder %s27, 3
      %p232 = por %p230, %p231
      %p233 = scmp.ne.s32.totalorder %s222, %s223
      %p234 = scmp.eq.s32.totalorder %s27, 0
      %p235 = por %p233, %p234
      %p236 = scmp.ne.s32.totalorder %s222, %s223
      %p237 = scmp.eq.s32.totalorder %s28, 3
      %p238 = por %p236, %p237
      %p240 = scmp.ne.s32.totalorder %s223, %s239
      %p241 = scmp.eq.s32.totalorder %s28, 0
      %p242 = por %p240, %p241
      %p243 = scmp.le.s32.totalorder 1, %s22
      %p244 = scmp.lt.s32.totalorder %s22, 5
      %p245 = pnand %p243, %p244
      %p246 = pneg %p245
      // Predicated region
      $region9: #{pam_forward.1} parent=5 // pred_check
        _
      $region10: #{pam_forward.1} parent=5 // pred_check_branch
        %248 = sbr.rel (%p245) target = $region12
      $region11: #{pam_forward.1} parent=5 // pred_region
        %s249 = ssub.s32 %s22, 1
        // Predicated region
        $region13: #{pam_forward.1} parent=11 // pred_check
          %p250 = pneg %p81
        $region14: #{pam_forward.1} parent=11 // pred_check_branch
          %252 = sbr.rel (%p250) target = $region16
        $region15: #{pam_forward.1} parent=11 // pred_region
          _
        $region16: #{pam_forward.1} parent=11 // pred_fallthru
          _
        // Predicated region
        $region17: #{pam_forward.1} parent=11 // pred_check
          %p253 = pneg %p102
        $region18: #{pam_forward.1} parent=11 // pred_check_branch
          %255 = sbr.rel (%p253) target = $region20
        $region19: #{pam_forward.1} parent=11 // pred_region
          _
        $region20: #{pam_forward.1} parent=11 // pred_fallthru
          _
        // Predicated region
        $region21: #{pam_forward.1} parent=11 // pred_check
          %p256 = pneg %p123
        $region22: #{pam_forward.1} parent=11 // pred_check_branch
          %258 = sbr.rel (%p256) target = $region24
        $region23: #{pam_forward.1} parent=11 // pred_region
          _
        $region24: #{pam_forward.1} parent=11 // pred_fallthru
          _
        // Predicated region
        $region25: #{pam_forward.1} parent=11 // pred_check
          %p259 = pneg %p144
        $region26: #{pam_forward.1} parent=11 // pred_check_branch
          %261 = sbr.rel (%p259) target = $region28
        $region27: #{pam_forward.1} parent=11 // pred_region
          _
        $region28: #{pam_forward.1} parent=11 // pred_fallthru
          _
        // Predicated region
        $region29: #{pam_forward.1} parent=11 // pred_check
          %p262 = pneg %p165
        $region30: #{pam_forward.1} parent=11 // pred_check_branch
          %264 = sbr.rel (%p262) target = $region32
        $region31: #{pam_forward.1} parent=11 // pred_region
          _
        $region32: #{pam_forward.1} parent=11 // pred_fallthru
          _
        // Predicated region
        $region33: #{pam_forward.1} parent=11 // pred_check
          %p265 = pneg %p186
        $region34: #{pam_forward.1} parent=11 // pred_check_branch
          %267 = sbr.rel (%p265) target = $region36
        $region35: #{pam_forward.1} parent=11 // pred_region
          _
        $region36: #{pam_forward.1} parent=11 // pred_fallthru
          _
        // Predicated region
        $region37: #{pam_forward.1} parent=11 // pred_check
          %p268 = pneg %p207
        $region38: #{pam_forward.1} parent=11 // pred_check_branch
          %270 = sbr.rel (%p268) target = $region40
        $region39: #{pam_forward.1} parent=11 // pred_region
          _
        $region40: #{pam_forward.1} parent=11 // pred_fallthru
          _
      $region12: #{pam_forward.1} parent=5 // pred_fallthru
        _
      %p271 = scmp.lt.s32.totalorder %s22, 4
      // Predicated region
      $region41: #{pam_forward.1} parent=5 // pred_check
        %p272 = pneg %p271
      $region42: #{pam_forward.1} parent=5 // pred_check_branch
        %274 = sbr.rel (%p272) target = $region44
      $region43: #{pam_forward.1} parent=5 // pred_region
        // Predicated region
        $region45: #{pam_forward.1} parent=43 // pred_check
          %p275 = pneg %p54
        $region46: #{pam_forward.1} parent=43 // pred_check_branch
          %277 = sbr.rel (%p275) target = $region48
        $region47: #{pam_forward.1} parent=43 // pred_region
          %s278 = sand.u32 %s44, 1
          %s279 = scalar_lea.sflag [#allocation6], %s278
          %s280 = sand.u32 %s44, 1
          %s281 = smul.addr %s280, 256
          %s282 = scalar_lea.vmem [#allocation5], %s281
          %s284 = ssub.s32 4096, 4096
          %285 = vsyncadd %s279, %s284
          %s286 = smul.addr %s29, 32
          %s287 = smul.addr %s286, 128
          %s288 = scalar_lea.hbm %s0, %s287
          %s289 = sshll.u32 %s282, 4
          %s290 = int_to_ptr.vmem [resolvable:$true] %s289
          %295 = dma.hbm_to_vmem [thread:$0]  %s288, 4096, %s290, %s279, 128, 128, 8
        $region48: #{pam_forward.1} parent=43 // pred_fallthru
          _
      $region44: #{pam_forward.1} parent=5 // pred_fallthru
        _
      %p296 = scmp.le.s32.totalorder 1, %s22
      %p297 = scmp.lt.s32.totalorder %s22, 5
      %p298 = pnand %p296, %p297
      %p299 = pneg %p298
      // Predicated region
      $region49: #{pam_forward.1} parent=5 // pred_check
        _
      $region50: #{pam_forward.1} parent=5 // pred_check_branch
        %301 = sbr.rel (%p298) target = $region52
      $region51: #{pam_forward.1} parent=5 // pred_region
        %s302 = ssub.s32 %s22, 1
        %s303 = sand.u32 %s47, 1
        %s304 = scalar_lea.sflag [#allocation6], %s303
        %s305 = sand.u32 %s47, 1
        %s306 = smul.addr %s305, 256
        %s307 = scalar_lea.vmem [#allocation5], %s306
        // Predicated region
        $region53: #{pam_forward.1} parent=51 // pred_check
          %p308 = pneg %p60
        $region54: #{pam_forward.1} parent=51 // pred_check_branch
          %310 = sbr.rel (%p308) target = $region56
        $region55: #{pam_forward.1} parent=51 // pred_region
          %311 = dma.done %s304, 4096
        $region56: #{pam_forward.1} parent=51 // pred_fallthru
          _
        %s312 = sand.u32 %s47, 1
        %s313 = scalar_lea.sflag [#allocation6], %s312
        %s314 = sand.u32 %s47, 1
        %s315 = smul.addr %s314, 256
        %s316 = scalar_lea.vmem [#allocation5], %s315
        %p317 = pneg %p60
        %p318 = pneg %p57
        %p319 = pneg %p81
        %p320 = pneg %p78
        %p321 = pneg %p102
        %p322 = pneg %p99
        %p323 = pneg %p123
        %p324 = pneg %p120
        %p325 = pneg %p144
        %p326 = pneg %p141
        %p327 = pneg %p165
        %p328 = pneg %p162
        %p329 = pneg %p186
        %p330 = pneg %p183
        %p331 = pneg %p207
        %p332 = pneg %p204
        %p333 = pneg %p235
        %p334 = pneg %p232
        %s335 = sand.u32 %s222, 1
        %s336 = scalar_lea.sflag [#allocation7], %s335
        %s337 = sand.u32 %s222, 1
        %s338 = smul.addr %s337, 128
        %s339 = scalar_lea.vmem [#allocation8], %s338
        %s340 = smul.u32 16, %s32
        %p341 = scmp.eq.s32.totalorder %s32, 0
        // Predicated region
        $region57: #{pam_forward.1} parent=51 // pred_check
          %p342 = pneg %p341
        $region58: #{pam_forward.1} parent=51 // pred_check_branch
          %344 = sbr.rel (%p342) target = $region60
        $region59: #{pam_forward.1} parent=51 // pred_region
          %v345 = vld [vmem:[%s307] sm:$0xff]
          %v346 = vld [vmem:[%s307 + $0x8] sm:$0xff]
          %v347 = vld [vmem:[%s307 + $0x10] sm:$0xff]
          %v348 = vld [vmem:[%s307 + $0x18] sm:$0xff]
          %v349 = vld [vmem:[%s307 + $0x20] sm:$0xff]
          %v350 = vld [vmem:[%s307 + $0x28] sm:$0xff]
          %v351 = vld [vmem:[%s307 + $0x30] sm:$0xff]
          %v352 = vld [vmem:[%s307 + $0x38] sm:$0xff]
          %v353 = vld [vmem:[%s307 + $0x40] sm:$0xff]
          %v354 = vld [vmem:[%s307 + $0x48] sm:$0xff]
          %v355 = vld [vmem:[%s307 + $0x50] sm:$0xff]
          %v356 = vld [vmem:[%s307 + $0x58] sm:$0xff]
          %v357 = vld [vmem:[%s307 + $0x60] sm:$0xff]
          %v358 = vld [vmem:[%s307 + $0x68] sm:$0xff]
          %v359 = vld [vmem:[%s307 + $0x70] sm:$0xff]
          %v360 = vld [vmem:[%s307 + $0x78] sm:$0xff]
          %v361 = vld [vmem:[%s307 + $0x80] sm:$0xff]
          %v362 = vld [vmem:[%s307 + $0x88] sm:$0xff]
          %v363 = vld [vmem:[%s307 + $0x90] sm:$0xff]
          %v364 = vld [vmem:[%s307 + $0x98] sm:$0xff]
          %v365 = vld [vmem:[%s307 + $0xa0] sm:$0xff]
          %v366 = vld [vmem:[%s307 + $0xa8] sm:$0xff]
          %v367 = vld [vmem:[%s307 + $0xb0] sm:$0xff]
          %v368 = vld [vmem:[%s307 + $0xb8] sm:$0xff]
          %v369 = vld [vmem:[%s307 + $0xc0] sm:$0xff]
          %v370 = vld [vmem:[%s307 + $0xc8] sm:$0xff]
          %v371 = vld [vmem:[%s307 + $0xd0] sm:$0xff]
          %v372 = vld [vmem:[%s307 + $0xd8] sm:$0xff]
          %v373 = vld [vmem:[%s307 + $0xe0] sm:$0xff]
          %v374 = vld [vmem:[%s307 + $0xe8] sm:$0xff]
          %v375 = vld [vmem:[%s307 + $0xf0] sm:$0xff]
          %v376 = vld [vmem:[%s307 + $0xf8] sm:$0xff]
          %v377 = vld [vmem:[%s3] sm:$0xff]
          %v378 = vld [vmem:[%s3 + $0x8] sm:$0xff]
          %v379 = vld [vmem:[%s3 + $0x10] sm:$0xff]
          %v380 = vld [vmem:[%s3 + $0x18] sm:$0xff]
          %v381 = vld [vmem:[%s3 + $0x20] sm:$0xff]
          %v382 = vld [vmem:[%s3 + $0x28] sm:$0xff]
          %v383 = vld [vmem:[%s3 + $0x30] sm:$0xff]
          %v384 = vld [vmem:[%s3 + $0x38] sm:$0xff]
          %v385 = vld [vmem:[%s4] sm:$0x1]
          %v387 = vlaneseq
          %v388 = vshrl.u32 %v387, 7
          %v389 = vsub.s32 0, %v388
          %v390 = vrot.slane %v385, %v389
          %vm392 = vcmask 523264
          %v394 = vsel %vm392, %v345, 0
          %v397 = vsel %vm392, %v346, 0
          %v400 = vsel %vm392, %v347, 0
          %v403 = vsel %vm392, %v348, 0
          %v406 = vsel %vm392, %v349, 0
          %v409 = vsel %vm392, %v350, 0
          %v412 = vsel %vm392, %v351, 0
          %v415 = vsel %vm392, %v352, 0
          %v418 = vsel %vm392, %v353, 0
          %v421 = vsel %vm392, %v354, 0
          %v424 = vsel %vm392, %v355, 0
          %v427 = vsel %vm392, %v356, 0
          %v430 = vsel %vm392, %v357, 0
          %v433 = vsel %vm392, %v358, 0
          %v436 = vsel %vm392, %v359, 0
          %v439 = vsel %vm392, %v360, 0
          %v442 = vsel %vm392, %v361, 0
          %v445 = vsel %vm392, %v362, 0
          %v448 = vsel %vm392, %v363, 0
          %v451 = vsel %vm392, %v364, 0
          %v454 = vsel %vm392, %v365, 0
          %v457 = vsel %vm392, %v366, 0
          %v460 = vsel %vm392, %v367, 0
          %v463 = vsel %vm392, %v368, 0
          %v466 = vsel %vm392, %v369, 0
          %v469 = vsel %vm392, %v370, 0
          %v472 = vsel %vm392, %v371, 0
          %v475 = vsel %vm392, %v372, 0
          %v478 = vsel %vm392, %v373, 0
          %v481 = vsel %vm392, %v374, 0
          %v484 = vsel %vm392, %v375, 0
          %v487 = vsel %vm392, %v376, 0
          %489 = vmatprep.subr.mxu0 0.0
          %490 = vmatpush1.msra.mxu0 %v377
          %491 = vmatprep.subr.mxu0 0.0
          %492 = vmatpush1.msra.mxu0 %v378
          %493 = vmatprep.subr.mxu0 0.0
          %494 = vmatpush1.msra.mxu0 %v379
          %495 = vmatprep.subr.mxu0 0.0
          %496 = vmatpush1.msra.mxu0 %v380
          %497 = vmatprep.subr.mxu0 0.0
          %498 = vmatpush1.msra.mxu0 %v381
          %499 = vmatprep.subr.mxu0 0.0
          %500 = vmatpush1.msra.mxu0 %v382
          %501 = vmatprep.subr.mxu0 0.0
          %502 = vmatpush1.msra.mxu0 %v383
          %503 = vmatprep.subr.mxu0 0.0
          %504 = vmatpush1.msra.mxu0 %v384
          %505 = vmatprep.subr.mxu0 0.0
          %506 = vmatpush1.msra.mxu0 0.0
          %507 = vmatprep.subr.mxu0 0.0
          %508 = vmatpush1.msra.mxu0 0.0
          %509 = vmatprep.subr.mxu0 0.0
          %510 = vmatpush1.msra.mxu0 0.0
          %511 = vmatprep.subr.mxu0 0.0
          %512 = vmatpush1.msra.mxu0 0.0
          %513 = vmatprep.subr.mxu0 0.0
          %514 = vmatpush1.msra.mxu0 0.0
          %515 = vmatprep.subr.mxu0 0.0
          %516 = vmatpush1.msra.mxu0 0.0
          %517 = vmatprep.subr.mxu0 0.0
          %518 = vmatpush1.msra.mxu0 0.0
          %519 = vmatprep.subr.mxu0 0.0
          %520 = vmatpush1.msra.mxu0 0.0
          %521 = vmatprep.subr.mxu0 0.0
          %522 = vmatpush1.msra.mxu0 0.0
          %523 = vmatprep.subr.mxu0 0.0
          %524 = vmatpush1.msra.mxu0 0.0
          %525 = vmatprep.subr.mxu0 0.0
          %526 = vmatpush1.msra.mxu0 0.0
          %527 = vmatprep.subr.mxu0 0.0
          %528 = vmatpush1.msra.mxu0 0.0
          %529 = vmatprep.subr.mxu0 0.0
          %530 = vmatpush1.msra.mxu0 0.0
          %531 = vmatprep.subr.mxu0 0.0
          %532 = vmatpush1.msra.mxu0 0.0
          %533 = vmatprep.subr.mxu0 0.0
          %534 = vmatpush1.msra.mxu0 0.0
          %535 = vmatprep.subr.mxu0 0.0
          %536 = vmatpush1.msra.mxu0 0.0
          %537 = vmatprep.subr.mxu0 0.0
          %538 = vmatpush1.msra.mxu0 0.0
          %539 = vmatprep.subr.mxu0 0.0
          %540 = vmatpush1.msra.mxu0 0.0
          %541 = vmatprep.subr.mxu0 0.0
          %542 = vmatpush1.msra.mxu0 0.0
          %543 = vmatprep.subr.mxu0 0.0
          %544 = vmatpush1.msra.mxu0 0.0
          %545 = vmatprep.subr.mxu0 0.0
          %546 = vmatpush1.msra.mxu0 0.0
          %547 = vmatprep.subr.mxu0 0.0
          %548 = vmatpush1.msra.mxu0 0.0
          %549 = vmatprep.subr.mxu0 0.0
          %550 = vmatpush1.msra.mxu0 0.0
          %551 = vmatprep.subr.mxu0 0.0
          %552 = vmatpush1.msra.mxu0 0.0
          %553 = vmatprep.mubr.f32.mxu0 0.0
          %554 = vmatmul.mubr.f32.gmra.mrb[0].mxu0 %v394
          %v555 = vpop.f32.mrb[0].mxu0
          %v556 = vadd.f32 %v390, %v555
          %v557 = vpop.f32.mrb[0].mxu0
          %558 = vmatprep.mubr.f32.mxu0 0.0
          %559 = vmatmul.mubr.f32.gmra.mrb[0].mxu0 %v397
          %v560 = vpop.f32.mrb[0].mxu0
          %v561 = vadd.f32 %v390, %v560
          %v562 = vpop.f32.mrb[0].mxu0
          %563 = vmatprep.mubr.f32.mxu0 0.0
          %564 = vmatmul.mubr.f32.gmra.mrb[0].mxu0 %v400
          %v565 = vpop.f32.mrb[0].mxu0
          %v566 = vadd.f32 %v390, %v565
          %v567 = vpop.f32.mrb[0].mxu0
          %568 = vmatprep.mubr.f32.mxu0 0.0
          %569 = vmatmul.mubr.f32.gmra.mrb[0].mxu0 %v403
          %v570 = vpop.f32.mrb[0].mxu0
          %v571 = vadd.f32 %v390, %v570
          %v572 = vpop.f32.mrb[0].mxu0
          %573 = vmatprep.mubr.f32.mxu0 0.0
          %574 = vmatmul.mubr.f32.gmra.mrb[0].mxu0 %v406
          %v575 = vpop.f32.mrb[0].mxu0
          %v576 = vadd.f32 %v390, %v575
          %v577 = vpop.f32.mrb[0].mxu0
          %578 = vmatprep.mubr.f32.mxu0 0.0
          %579 = vmatmul.mubr.f32.gmra.mrb[0].mxu0 %v409
          %v580 = vpop.f32.mrb[0].mxu0
          %v581 = vadd.f32 %v390, %v580
          %v582 = vpop.f32.mrb[0].mxu0
          %583 = vmatprep.mubr.f32.mxu0 0.0
          %584 = vmatmul.mubr.f32.gmra.mrb[0].mxu0 %v412
          %v585 = vpop.f32.mrb[0].mxu0
          %v586 = vadd.f32 %v390, %v585
          %v587 = vpop.f32.mrb[0].mxu0
          %588 = vmatprep.mubr.f32.mxu0 0.0
          %589 = vmatmul.mubr.f32.gmra.mrb[0].mxu0 %v415
          %v590 = vpop.f32.mrb[0].mxu0
          %v591 = vadd.f32 %v390, %v590
          %v592 = vpop.f32.mrb[0].mxu0
          %593 = vmatprep.mubr.f32.mxu0 0.0
          %594 = vmatmul.mubr.f32.gmra.mrb[0].mxu0 %v418
          %v595 = vpop.f32.mrb[0].mxu0
          %v596 = vadd.f32 %v390, %v595
          %v597 = vpop.f32.mrb[0].mxu0
          %598 = vmatprep.mubr.f32.mxu0 0.0
          %599 = vmatmul.mubr.f32.gmra.mrb[0].mxu0 %v421
          %v600 = vpop.f32.mrb[0].mxu0
          %v601 = vadd.f32 %v390, %v600
          %v602 = vpop.f32.mrb[0].mxu0
          %603 = vmatprep.mubr.f32.mxu0 0.0
          %604 = vmatmul.mubr.f32.gmra.mrb[0].mxu0 %v424
          %v605 = vpop.f32.mrb[0].mxu0
          %v606 = vadd.f32 %v390, %v605
          %v607 = vpop.f32.mrb[0].mxu0
          %608 = vmatprep.mubr.f32.mxu0 0.0
          %609 = vmatmul.mubr.f32.gmra.mrb[0].mxu0 %v427
          %v610 = vpop.f32.mrb[0].mxu0
          %v611 = vadd.f32 %v390, %v610
          %v612 = vpop.f32.mrb[0].mxu0
          %613 = vmatprep.mubr.f32.mxu0 0.0
          %614 = vmatmul.mubr.f32.gmra.mrb[0].mxu0 %v430
          %v615 = vpop.f32.mrb[0].mxu0
          %v616 = vadd.f32 %v390, %v615
          %v617 = vpop.f32.mrb[0].mxu0
          %618 = vmatprep.mubr.f32.mxu0 0.0
          %619 = vmatmul.mubr.f32.gmra.mrb[0].mxu0 %v433
          %v620 = vpop.f32.mrb[0].mxu0
          %v621 = vadd.f32 %v390, %v620
          %v622 = vpop.f32.mrb[0].mxu0
          %623 = vmatprep.mubr.f32.mxu0 0.0
          %624 = vmatmul.mubr.f32.gmra.mrb[0].mxu0 %v436
          %v625 = vpop.f32.mrb[0].mxu0
          %v626 = vadd.f32 %v390, %v625
          %v627 = vpop.f32.mrb[0].mxu0
          %628 = vmatprep.mubr.f32.mxu0 0.0
          %629 = vmatmul.mubr.f32.gmra.mrb[0].mxu0 %v439
          %v630 = vpop.f32.mrb[0].mxu0
          %v631 = vadd.f32 %v390, %v630
          %v632 = vpop.f32.mrb[0].mxu0
          %633 = vmatprep.mubr.f32.mxu0 0.0
          %634 = vmatmul.mubr.f32.gmra.mrb[0].mxu0 %v442
          %v635 = vpop.f32.mrb[0].mxu0
          %v636 = vadd.f32 %v390, %v635
          %v637 = vpop.f32.mrb[0].mxu0
          %638 = vmatprep.mubr.f32.mxu0 0.0
          %639 = vmatmul.mubr.f32.gmra.mrb[0].mxu0 %v445
          %v640 = vpop.f32.mrb[0].mxu0
          %v641 = vadd.f32 %v390, %v640
          %v642 = vpop.f32.mrb[0].mxu0
          %643 = vmatprep.mubr.f32.mxu0 0.0
          %644 = vmatmul.mubr.f32.gmra.mrb[0].mxu0 %v448
          %v645 = vpop.f32.mrb[0].mxu0
          %v646 = vadd.f32 %v390, %v645
          %v647 = vpop.f32.mrb[0].mxu0
          %648 = vmatprep.mubr.f32.mxu0 0.0
          %649 = vmatmul.mubr.f32.gmra.mrb[0].mxu0 %v451
          %v650 = vpop.f32.mrb[0].mxu0
          %v651 = vadd.f32 %v390, %v650
          %v652 = vpop.f32.mrb[0].mxu0
          %653 = vmatprep.mubr.f32.mxu0 0.0
          %654 = vmatmul.mubr.f32.gmra.mrb[0].mxu0 %v454
          %v655 = vpop.f32.mrb[0].mxu0
          %v656 = vadd.f32 %v390, %v655
          %v657 = vpop.f32.mrb[0].mxu0
          %658 = vmatprep.mubr.f32.mxu0 0.0
          %659 = vmatmul.mubr.f32.gmra.mrb[0].mxu0 %v457
          %v660 = vpop.f32.mrb[0].mxu0
          %v661 = vadd.f32 %v390, %v660
          %v662 = vpop.f32.mrb[0].mxu0
          %663 = vmatprep.mubr.f32.mxu0 0.0
          %664 = vmatmul.mubr.f32.gmra.mrb[0].mxu0 %v460
          %v665 = vpop.f32.mrb[0].mxu0
          %v666 = vadd.f32 %v390, %v665
          %v667 = vpop.f32.mrb[0].mxu0
          %668 = vmatprep.mubr.f32.mxu0 0.0
          %669 = vmatmul.mubr.f32.gmra.mrb[0].mxu0 %v463
          %v670 = vpop.f32.mrb[0].mxu0
          %v671 = vadd.f32 %v390, %v670
          %v672 = vpop.f32.mrb[0].mxu0
          %673 = vmatprep.mubr.f32.mxu0 0.0
          %674 = vmatmul.mubr.f32.gmra.mrb[0].mxu0 %v466
          %v675 = vpop.f32.mrb[0].mxu0
          %v676 = vadd.f32 %v390, %v675
          %v677 = vpop.f32.mrb[0].mxu0
          %678 = vmatprep.mubr.f32.mxu0 0.0
          %679 = vmatmul.mubr.f32.gmra.mrb[0].mxu0 %v469
          %v680 = vpop.f32.mrb[0].mxu0
          %v681 = vadd.f32 %v390, %v680
          %v682 = vpop.f32.mrb[0].mxu0
          %683 = vmatprep.mubr.f32.mxu0 0.0
          %684 = vmatmul.mubr.f32.gmra.mrb[0].mxu0 %v472
          %v685 = vpop.f32.mrb[0].mxu0
          %v686 = vadd.f32 %v390, %v685
          %v687 = vpop.f32.mrb[0].mxu0
          %688 = vmatprep.mubr.f32.mxu0 0.0
          %689 = vmatmul.mubr.f32.gmra.mrb[0].mxu0 %v475
          %v690 = vpop.f32.mrb[0].mxu0
          %v691 = vadd.f32 %v390, %v690
          %v692 = vpop.f32.mrb[0].mxu0
          %693 = vmatprep.mubr.f32.mxu0 0.0
          %694 = vmatmul.mubr.f32.gmra.mrb[0].mxu0 %v478
          %v695 = vpop.f32.mrb[0].mxu0
          %v696 = vadd.f32 %v390, %v695
          %v697 = vpop.f32.mrb[0].mxu0
          %698 = vmatprep.mubr.f32.mxu0 0.0
          %699 = vmatmul.mubr.f32.gmra.mrb[0].mxu0 %v481
          %v700 = vpop.f32.mrb[0].mxu0
          %v701 = vadd.f32 %v390, %v700
          %v702 = vpop.f32.mrb[0].mxu0
          %703 = vmatprep.mubr.f32.mxu0 0.0
          %704 = vmatmul.mubr.f32.gmra.mrb[0].mxu0 %v484
          %v705 = vpop.f32.mrb[0].mxu0
          %v706 = vadd.f32 %v390, %v705
          %v707 = vpop.f32.mrb[0].mxu0
          %708 = vmatprep.mubr.f32.mxu0 0.0
          %709 = vmatmul.mubr.f32.gmra.mrb[0].mxu0 %v487
          %v710 = vpop.f32.mrb[0].mxu0
          %v711 = vadd.f32 %v390, %v710
          %v712 = vpop.f32.mrb[0].mxu0
          %713 = vdwg.mxu0
          %vm714 = vcmask 64512
          %715 = vst.msk [vmem:[#allocation2] sm:$0xff] %vm714, %v556
          %716 = vst.msk [vmem:[#allocation2 + $0x8] sm:$0xff] %vm714, %v561
          %717 = vst.msk [vmem:[#allocation2 + $0x10] sm:$0xff] %vm714, %v566
          %718 = vst.msk [vmem:[#allocation2 + $0x18] sm:$0xff] %vm714, %v571
          %719 = vst.msk [vmem:[#allocation2 + $0x20] sm:$0xff] %vm714, %v576
          %720 = vst.msk [vmem:[#allocation2 + $0x28] sm:$0xff] %vm714, %v581
          %721 = vst.msk [vmem:[#allocation2 + $0x30] sm:$0xff] %vm714, %v586
          %722 = vst.msk [vmem:[#allocation2 + $0x38] sm:$0xff] %vm714, %v591
          %723 = vst.msk [vmem:[#allocation2 + $0x40] sm:$0xff] %vm714, %v596
          %724 = vst.msk [vmem:[#allocation2 + $0x48] sm:$0xff] %vm714, %v601
          %725 = vst.msk [vmem:[#allocation2 + $0x50] sm:$0xff] %vm714, %v606
          %726 = vst.msk [vmem:[#allocation2 + $0x58] sm:$0xff] %vm714, %v611
          %727 = vst.msk [vmem:[#allocation2 + $0x60] sm:$0xff] %vm714, %v616
          %728 = vst.msk [vmem:[#allocation2 + $0x68] sm:$0xff] %vm714, %v621
          %729 = vst.msk [vmem:[#allocation2 + $0x70] sm:$0xff] %vm714, %v626
          %730 = vst.msk [vmem:[#allocation2 + $0x78] sm:$0xff] %vm714, %v631
          %731 = vst.msk [vmem:[#allocation2 + $0x80] sm:$0xff] %vm714, %v636
          %732 = vst.msk [vmem:[#allocation2 + $0x88] sm:$0xff] %vm714, %v641
          %733 = vst.msk [vmem:[#allocation2 + $0x90] sm:$0xff] %vm714, %v646
          %734 = vst.msk [vmem:[#allocation2 + $0x98] sm:$0xff] %vm714, %v651
          %735 = vst.msk [vmem:[#allocation2 + $0xa0] sm:$0xff] %vm714, %v656
          %736 = vst.msk [vmem:[#allocation2 + $0xa8] sm:$0xff] %vm714, %v661
          %737 = vst.msk [vmem:[#allocation2 + $0xb0] sm:$0xff] %vm714, %v666
          %738 = vst.msk [vmem:[#allocation2 + $0xb8] sm:$0xff] %vm714, %v671
          %739 = vst.msk [vmem:[#allocation2 + $0xc0] sm:$0xff] %vm714, %v676
          %740 = vst.msk [vmem:[#allocation2 + $0xc8] sm:$0xff] %vm714, %v681
          %741 = vst.msk [vmem:[#allocation2 + $0xd0] sm:$0xff] %vm714, %v686
          %742 = vst.msk [vmem:[#allocation2 + $0xd8] sm:$0xff] %vm714, %v691
          %743 = vst.msk [vmem:[#allocation2 + $0xe0] sm:$0xff] %vm714, %v696
          %744 = vst.msk [vmem:[#allocation2 + $0xe8] sm:$0xff] %vm714, %v701
          %745 = vst.msk [vmem:[#allocation2 + $0xf0] sm:$0xff] %vm714, %v706
          %746 = vst.msk [vmem:[#allocation2 + $0xf8] sm:$0xff] %vm714, %v711
          %v747 = vld [vmem:[%s5] sm:$0xff]
          %v748 = vld [vmem:[%s5 + $0x8] sm:$0xff]
          %v749 = vld [vmem:[%s5 + $0x10] sm:$0xff]
          %v750 = vld [vmem:[%s5 + $0x18] sm:$0xff]
          %v751 = vld [vmem:[%s5 + $0x20] sm:$0xff]
          %v752 = vld [vmem:[%s5 + $0x28] sm:$0xff]
          %v753 = vld [vmem:[%s5 + $0x30] sm:$0xff]
          %v754 = vld [vmem:[%s5 + $0x38] sm:$0xff]
          %v755 = vld [vmem:[%s6] sm:$0x1]
          %v757 = vlaneseq
          %v758 = vshrl.u32 %v757, 7
          %v759 = vsub.s32 0, %v758
          %v760 = vrot.slane %v755, %v759
          %762 = vmatprep.subr.mxu0 0.0
          %763 = vmatpush1.msra.mxu0 %v747
          %764 = vmatprep.subr.mxu0 0.0
          %765 = vmatpush1.msra.mxu0 %v748
          %766 = vmatprep.subr.mxu0 0.0
          %767 = vmatpush1.msra.mxu0 %v749
          %768 = vmatprep.subr.mxu0 0.0
          %769 = vmatpush1.msra.mxu0 %v750
          %770 = vmatprep.subr.mxu0 0.0
          %771 = vmatpush1.msra.mxu0 %v751
          %772 = vmatprep.subr.mxu0 0.0
          %773 = vmatpush1.msra.mxu0 %v752
          %774 = vmatprep.subr.mxu0 0.0
          %775 = vmatpush1.msra.mxu0 %v753
          %776 = vmatprep.subr.mxu0 0.0
          %777 = vmatpush1.msra.mxu0 %v754
          %778 = vmatprep.subr.mxu0 0.0
          %779 = vmatpush1.msra.mxu0 0.0
          %780 = vmatprep.subr.mxu0 0.0
          %781 = vmatpush1.msra.mxu0 0.0
          %782 = vmatprep.subr.mxu0 0.0
          %783 = vmatpush1.msra.mxu0 0.0
          %784 = vmatprep.subr.mxu0 0.0
          %785 = vmatpush1.msra.mxu0 0.0
          %786 = vmatprep.subr.mxu0 0.0
          %787 = vmatpush1.msra.mxu0 0.0
          %788 = vmatprep.subr.mxu0 0.0
          %789 = vmatpush1.msra.mxu0 0.0
          %790 = vmatprep.subr.mxu0 0.0
          %791 = vmatpush1.msra.mxu0 0.0
          %792 = vmatprep.subr.mxu0 0.0
          %793 = vmatpush1.msra.mxu0 0.0
          %794 = vmatprep.subr.mxu0 0.0
          %795 = vmatpush1.msra.mxu0 0.0
          %796 = vmatprep.subr.mxu0 0.0
          %797 = vmatpush1.msra.mxu0 0.0
          %798 = vmatprep.subr.mxu0 0.0
          %799 = vmatpush1.msra.mxu0 0.0
          %800 = vmatprep.subr.mxu0 0.0
          %801 = vmatpush1.msra.mxu0 0.0
          %802 = vmatprep.subr.mxu0 0.0
          %803 = vmatpush1.msra.mxu0 0.0
          %804 = vmatprep.subr.mxu0 0.0
          %805 = vmatpush1.msra.mxu0 0.0
          %806 = vmatprep.subr.mxu0 0.0
          %807 = vmatpush1.msra.mxu0 0.0
          %808 = vmatprep.subr.mxu0 0.0
          %809 = vmatpush1.msra.mxu0 0.0
          %810 = vmatprep.subr.mxu0 0.0
          %811 = vmatpush1.msra.mxu0 0.0
          %812 = vmatprep.subr.mxu0 0.0
          %813 = vmatpush1.msra.mxu0 0.0
          %814 = vmatprep.subr.mxu0 0.0
          %815 = vmatpush1.msra.mxu0 0.0
          %816 = vmatprep.subr.mxu0 0.0
          %817 = vmatpush1.msra.mxu0 0.0
          %818 = vmatprep.subr.mxu0 0.0
          %819 = vmatpush1.msra.mxu0 0.0
          %820 = vmatprep.subr.mxu0 0.0
          %821 = vmatpush1.msra.mxu0 0.0
          %822 = vmatprep.subr.mxu0 0.0
          %823 = vmatpush1.msra.mxu0 0.0
          %824 = vmatprep.subr.mxu0 0.0
          %825 = vmatpush1.msra.mxu0 0.0
          %826 = vmatprep.mubr.f32.mxu0 0.0
          %827 = vmatmul.mubr.f32.gmra.mrb[0].mxu0 %v394
          %v828 = vpop.f32.mrb[0].mxu0
          %v829 = vadd.f32 %v760, %v828
          %v830 = vpop.f32.mrb[0].mxu0
          %831 = vmatprep.mubr.f32.mxu0 0.0
          %832 = vmatmul.mubr.f32.gmra.mrb[0].mxu0 %v397
          %v833 = vpop.f32.mrb[0].mxu0
          %v834 = vadd.f32 %v760, %v833
          %v835 = vpop.f32.mrb[0].mxu0
          %836 = vmatprep.mubr.f32.mxu0 0.0
          %837 = vmatmul.mubr.f32.gmra.mrb[0].mxu0 %v400
          %v838 = vpop.f32.mrb[0].mxu0
          %v839 = vadd.f32 %v760, %v838
          %v840 = vpop.f32.mrb[0].mxu0
          %841 = vmatprep.mubr.f32.mxu0 0.0
          %842 = vmatmul.mubr.f32.gmra.mrb[0].mxu0 %v403
          %v843 = vpop.f32.mrb[0].mxu0
          %v844 = vadd.f32 %v760, %v843
          %v845 = vpop.f32.mrb[0].mxu0
          %846 = vmatprep.mubr.f32.mxu0 0.0
          %847 = vmatmul.mubr.f32.gmra.mrb[0].mxu0 %v406
          %v848 = vpop.f32.mrb[0].mxu0
          %v849 = vadd.f32 %v760, %v848
          %v850 = vpop.f32.mrb[0].mxu0
          %851 = vmatprep.mubr.f32.mxu0 0.0
          %852 = vmatmul.mubr.f32.gmra.mrb[0].mxu0 %v409
          %v853 = vpop.f32.mrb[0].mxu0
          %v854 = vadd.f32 %v760, %v853
          %v855 = vpop.f32.mrb[0].mxu0
          %856 = vmatprep.mubr.f32.mxu0 0.0
          %857 = vmatmul.mubr.f32.gmra.mrb[0].mxu0 %v412
          %v858 = vpop.f32.mrb[0].mxu0
          %v859 = vadd.f32 %v760, %v858
          %v860 = vpop.f32.mrb[0].mxu0
          %861 = vmatprep.mubr.f32.mxu0 0.0
          %862 = vmatmul.mubr.f32.gmra.mrb[0].mxu0 %v415
          %v863 = vpop.f32.mrb[0].mxu0
          %v864 = vadd.f32 %v760, %v863
          %v865 = vpop.f32.mrb[0].mxu0
          %866 = vmatprep.mubr.f32.mxu0 0.0
          %867 = vmatmul.mubr.f32.gmra.mrb[0].mxu0 %v418
          %v868 = vpop.f32.mrb[0].mxu0
          %v869 = vadd.f32 %v760, %v868
          %v870 = vpop.f32.mrb[0].mxu0
          %871 = vmatprep.mubr.f32.mxu0 0.0
          %872 = vmatmul.mubr.f32.gmra.mrb[0].mxu0 %v421
          %v873 = vpop.f32.mrb[0].mxu0
          %v874 = vadd.f32 %v760, %v873
          %v875 = vpop.f32.mrb[0].mxu0
          %876 = vmatprep.mubr.f32.mxu0 0.0
          %877 = vmatmul.mubr.f32.gmra.mrb[0].mxu0 %v424
          %v878 = vpop.f32.mrb[0].mxu0
          %v879 = vadd.f32 %v760, %v878
          %v880 = vpop.f32.mrb[0].mxu0
          %881 = vmatprep.mubr.f32.mxu0 0.0
          %882 = vmatmul.mubr.f32.gmra.mrb[0].mxu0 %v427
          %v883 = vpop.f32.mrb[0].mxu0
          %v884 = vadd.f32 %v760, %v883
          %v885 = vpop.f32.mrb[0].mxu0
          %886 = vmatprep.mubr.f32.mxu0 0.0
          %887 = vmatmul.mubr.f32.gmra.mrb[0].mxu0 %v430
          %v888 = vpop.f32.mrb[0].mxu0
          %v889 = vadd.f32 %v760, %v888
          %v890 = vpop.f32.mrb[0].mxu0
          %891 = vmatprep.mubr.f32.mxu0 0.0
          %892 = vmatmul.mubr.f32.gmra.mrb[0].mxu0 %v433
          %v893 = vpop.f32.mrb[0].mxu0
          %v894 = vadd.f32 %v760, %v893
          %v895 = vpop.f32.mrb[0].mxu0
          %896 = vmatprep.mubr.f32.mxu0 0.0
          %897 = vmatmul.mubr.f32.gmra.mrb[0].mxu0 %v436
          %v898 = vpop.f32.mrb[0].mxu0
          %v899 = vadd.f32 %v760, %v898
          %v900 = vpop.f32.mrb[0].mxu0
          %901 = vmatprep.mubr.f32.mxu0 0.0
          %902 = vmatmul.mubr.f32.gmra.mrb[0].mxu0 %v439
          %v903 = vpop.f32.mrb[0].mxu0
          %v904 = vadd.f32 %v760, %v903
          %v905 = vpop.f32.mrb[0].mxu0
          %906 = vmatprep.mubr.f32.mxu0 0.0
          %907 = vmatmul.mubr.f32.gmra.mrb[0].mxu0 %v442
          %v908 = vpop.f32.mrb[0].mxu0
          %v909 = vadd.f32 %v760, %v908
          %v910 = vpop.f32.mrb[0].mxu0
          %911 = vmatprep.mubr.f32.mxu0 0.0
          %912 = vmatmul.mubr.f32.gmra.mrb[0].mxu0 %v445
          %v913 = vpop.f32.mrb[0].mxu0
          %v914 = vadd.f32 %v760, %v913
          %v915 = vpop.f32.mrb[0].mxu0
          %916 = vmatprep.mubr.f32.mxu0 0.0
          %917 = vmatmul.mubr.f32.gmra.mrb[0].mxu0 %v448
          %v918 = vpop.f32.mrb[0].mxu0
          %v919 = vadd.f32 %v760, %v918
          %v920 = vpop.f32.mrb[0].mxu0
          %921 = vmatprep.mubr.f32.mxu0 0.0
          %922 = vmatmul.mubr.f32.gmra.mrb[0].mxu0 %v451
          %v923 = vpop.f32.mrb[0].mxu0
          %v924 = vadd.f32 %v760, %v923
          %v925 = vpop.f32.mrb[0].mxu0
          %926 = vmatprep.mubr.f32.mxu0 0.0
          %927 = vmatmul.mubr.f32.gmra.mrb[0].mxu0 %v454
          %v928 = vpop.f32.mrb[0].mxu0
          %v929 = vadd.f32 %v760, %v928
          %v930 = vpop.f32.mrb[0].mxu0
          %931 = vmatprep.mubr.f32.mxu0 0.0
          %932 = vmatmul.mubr.f32.gmra.mrb[0].mxu0 %v457
          %v933 = vpop.f32.mrb[0].mxu0
          %v934 = vadd.f32 %v760, %v933
          %v935 = vpop.f32.mrb[0].mxu0
          %936 = vmatprep.mubr.f32.mxu0 0.0
          %937 = vmatmul.mubr.f32.gmra.mrb[0].mxu0 %v460
          %v938 = vpop.f32.mrb[0].mxu0
          %v939 = vadd.f32 %v760, %v938
          %v940 = vpop.f32.mrb[0].mxu0
          %941 = vmatprep.mubr.f32.mxu0 0.0
          %942 = vmatmul.mubr.f32.gmra.mrb[0].mxu0 %v463
          %v943 = vpop.f32.mrb[0].mxu0
          %v944 = vadd.f32 %v760, %v943
          %v945 = vpop.f32.mrb[0].mxu0
          %946 = vmatprep.mubr.f32.mxu0 0.0
          %947 = vmatmul.mubr.f32.gmra.mrb[0].mxu0 %v466
          %v948 = vpop.f32.mrb[0].mxu0
          %v949 = vadd.f32 %v760, %v948
          %v950 = vpop.f32.mrb[0].mxu0
          %951 = vmatprep.mubr.f32.mxu0 0.0
          %952 = vmatmul.mubr.f32.gmra.mrb[0].mxu0 %v469
          %v953 = vpop.f32.mrb[0].mxu0
          %v954 = vadd.f32 %v760, %v953
          %v955 = vpop.f32.mrb[0].mxu0
          %956 = vmatprep.mubr.f32.mxu0 0.0
          %957 = vmatmul.mubr.f32.gmra.mrb[0].mxu0 %v472
          %v958 = vpop.f32.mrb[0].mxu0
          %v959 = vadd.f32 %v760, %v958
          %v960 = vpop.f32.mrb[0].mxu0
          %961 = vmatprep.mubr.f32.mxu0 0.0
          %962 = vmatmul.mubr.f32.gmra.mrb[0].mxu0 %v475
          %v963 = vpop.f32.mrb[0].mxu0
          %v964 = vadd.f32 %v760, %v963
          %v965 = vpop.f32.mrb[0].mxu0
          %966 = vmatprep.mubr.f32.mxu0 0.0
          %967 = vmatmul.mubr.f32.gmra.mrb[0].mxu0 %v478
          %v968 = vpop.f32.mrb[0].mxu0
          %v969 = vadd.f32 %v760, %v968
          %v970 = vpop.f32.mrb[0].mxu0
          %971 = vmatprep.mubr.f32.mxu0 0.0
          %972 = vmatmul.mubr.f32.gmra.mrb[0].mxu0 %v481
          %v973 = vpop.f32.mrb[0].mxu0
          %v974 = vadd.f32 %v760, %v973
          %v975 = vpop.f32.mrb[0].mxu0
          %976 = vmatprep.mubr.f32.mxu0 0.0
          %977 = vmatmul.mubr.f32.gmra.mrb[0].mxu0 %v484
          %v978 = vpop.f32.mrb[0].mxu0
          %v979 = vadd.f32 %v760, %v978
          %v980 = vpop.f32.mrb[0].mxu0
          %981 = vmatprep.mubr.f32.mxu0 0.0
          %982 = vmatmul.mubr.f32.gmra.mrb[0].mxu0 %v487
          %v983 = vpop.f32.mrb[0].mxu0
          %v984 = vadd.f32 %v760, %v983
          %v985 = vpop.f32.mrb[0].mxu0
          %986 = vdwg.mxu0
          %987 = vst.msk [vmem:[#allocation3] sm:$0xff] %vm392, %v829
          %988 = vst.msk [vmem:[#allocation3 + $0x8] sm:$0xff] %vm392, %v834
          %989 = vst.msk [vmem:[#allocation3 + $0x10] sm:$0xff] %vm392, %v839
          %990 = vst.msk [vmem:[#allocation3 + $0x18] sm:$0xff] %vm392, %v844
          %991 = vst.msk [vmem:[#allocation3 + $0x20] sm:$0xff] %vm392, %v849
          %992 = vst.msk [vmem:[#allocation3 + $0x28] sm:$0xff] %vm392, %v854
          %993 = vst.msk [vmem:[#allocation3 + $0x30] sm:$0xff] %vm392, %v859
          %994 = vst.msk [vmem:[#allocation3 + $0x38] sm:$0xff] %vm392, %v864
          %995 = vst.msk [vmem:[#allocation3 + $0x40] sm:$0xff] %vm392, %v869
          %996 = vst.msk [vmem:[#allocation3 + $0x48] sm:$0xff] %vm392, %v874
          %997 = vst.msk [vmem:[#allocation3 + $0x50] sm:$0xff] %vm392, %v879
          %998 = vst.msk [vmem:[#allocation3 + $0x58] sm:$0xff] %vm392, %v884
          %999 = vst.msk [vmem:[#allocation3 + $0x60] sm:$0xff] %vm392, %v889
          %1000 = vst.msk [vmem:[#allocation3 + $0x68] sm:$0xff] %vm392, %v894
          %1001 = vst.msk [vmem:[#allocation3 + $0x70] sm:$0xff] %vm392, %v899
          %1002 = vst.msk [vmem:[#allocation3 + $0x78] sm:$0xff] %vm392, %v904
          %1003 = vst.msk [vmem:[#allocation3 + $0x80] sm:$0xff] %vm392, %v909
          %1004 = vst.msk [vmem:[#allocation3 + $0x88] sm:$0xff] %vm392, %v914
          %1005 = vst.msk [vmem:[#allocation3 + $0x90] sm:$0xff] %vm392, %v919
          %1006 = vst.msk [vmem:[#allocation3 + $0x98] sm:$0xff] %vm392, %v924
          %1007 = vst.msk [vmem:[#allocation3 + $0xa0] sm:$0xff] %vm392, %v929
          %1008 = vst.msk [vmem:[#allocation3 + $0xa8] sm:$0xff] %vm392, %v934
          %1009 = vst.msk [vmem:[#allocation3 + $0xb0] sm:$0xff] %vm392, %v939
          %1010 = vst.msk [vmem:[#allocation3 + $0xb8] sm:$0xff] %vm392, %v944
          %1011 = vst.msk [vmem:[#allocation3 + $0xc0] sm:$0xff] %vm392, %v949
          %1012 = vst.msk [vmem:[#allocation3 + $0xc8] sm:$0xff] %vm392, %v954
          %1013 = vst.msk [vmem:[#allocation3 + $0xd0] sm:$0xff] %vm392, %v959
          %1014 = vst.msk [vmem:[#allocation3 + $0xd8] sm:$0xff] %vm392, %v964
          %1015 = vst.msk [vmem:[#allocation3 + $0xe0] sm:$0xff] %vm392, %v969
          %1016 = vst.msk [vmem:[#allocation3 + $0xe8] sm:$0xff] %vm392, %v974
          %1017 = vst.msk [vmem:[#allocation3 + $0xf0] sm:$0xff] %vm392, %v979
          %1018 = vst.msk [vmem:[#allocation3 + $0xf8] sm:$0xff] %vm392, %v984
        $region60: #{pam_forward.1} parent=51 // pred_fallthru
          _
        %s1019 = smul.u32 %s32, 128
        %s1020 = scalar_lea.vmem %s307, %s1019 [#allocation5]
        %v1021 = vld [vmem:[%s1020] sm:$0xff]
        %v1022 = vld [vmem:[%s1020 + $0x8] sm:$0xff]
        %v1023 = vld [vmem:[%s1020 + $0x10] sm:$0xff]
        %v1024 = vld [vmem:[%s1020 + $0x18] sm:$0xff]
        %v1025 = vld [vmem:[%s1020 + $0x20] sm:$0xff]
        %v1026 = vld [vmem:[%s1020 + $0x28] sm:$0xff]
        %v1027 = vld [vmem:[%s1020 + $0x30] sm:$0xff]
        %v1028 = vld [vmem:[%s1020 + $0x38] sm:$0xff]
        %v1029 = vld [vmem:[%s1020 + $0x40] sm:$0xff]
        %v1030 = vld [vmem:[%s1020 + $0x48] sm:$0xff]
        %v1031 = vld [vmem:[%s1020 + $0x50] sm:$0xff]
        %v1032 = vld [vmem:[%s1020 + $0x58] sm:$0xff]
        %v1033 = vld [vmem:[%s1020 + $0x60] sm:$0xff]
        %v1034 = vld [vmem:[%s1020 + $0x68] sm:$0xff]
        %v1035 = vld [vmem:[%s1020 + $0x70] sm:$0xff]
        %v1036 = vld [vmem:[%s1020 + $0x78] sm:$0xff]
        %v1037 = vld [vmem:[%s1] sm:$0xff]
        %v1038 = vld [vmem:[%s1 + $0x8] sm:$0xff]
        %v1039 = vld [vmem:[%s1 + $0x10] sm:$0xff]
        %v1040 = vld [vmem:[%s1 + $0x18] sm:$0xff]
        %v1041 = vld [vmem:[%s1 + $0x20] sm:$0xff]
        %v1042 = vld [vmem:[%s1 + $0x28] sm:$0xff]
        %v1043 = vld [vmem:[%s1 + $0x30] sm:$0xff]
        %v1044 = vld [vmem:[%s1 + $0x38] sm:$0xff]
        %v1045 = vld [vmem:[%s2] sm:$0x1]
        %v1047 = vlaneseq
        %v1048 = vshrl.u32 %v1047, 7
        %v1049 = vsub.s32 0, %v1048
        %v1050 = vrot.slane %v1045, %v1049
        %vm1052 = vcmask 523264
        %v1054 = vsel %vm1052, %v1021, 0
        %v1057 = vsel %vm1052, %v1022, 0
        %v1060 = vsel %vm1052, %v1023, 0
        %v1063 = vsel %vm1052, %v1024, 0
        %v1066 = vsel %vm1052, %v1025, 0
        %v1069 = vsel %vm1052, %v1026, 0
        %v1072 = vsel %vm1052, %v1027, 0
        %v1075 = vsel %vm1052, %v1028, 0
        %v1078 = vsel %vm1052, %v1029, 0
        %v1081 = vsel %vm1052, %v1030, 0
        %v1084 = vsel %vm1052, %v1031, 0
        %v1087 = vsel %vm1052, %v1032, 0
        %v1090 = vsel %vm1052, %v1033, 0
        %v1093 = vsel %vm1052, %v1034, 0
        %v1096 = vsel %vm1052, %v1035, 0
        %v1099 = vsel %vm1052, %v1036, 0
        %1101 = vmatprep.subr.mxu0 0.0
        %1102 = vmatpush1.msra.mxu0 %v1037
        %1103 = vmatprep.subr.mxu0 0.0
        %1104 = vmatpush1.msra.mxu0 %v1038
        %1105 = vmatprep.subr.mxu0 0.0
        %1106 = vmatpush1.msra.mxu0 %v1039
        %1107 = vmatprep.subr.mxu0 0.0
        %1108 = vmatpush1.msra.mxu0 %v1040
        %1109 = vmatprep.subr.mxu0 0.0
        %1110 = vmatpush1.msra.mxu0 %v1041
        %1111 = vmatprep.subr.mxu0 0.0
        %1112 = vmatpush1.msra.mxu0 %v1042
        %1113 = vmatprep.subr.mxu0 0.0
        %1114 = vmatpush1.msra.mxu0 %v1043
        %1115 = vmatprep.subr.mxu0 0.0
        %1116 = vmatpush1.msra.mxu0 %v1044
        %1117 = vmatprep.subr.mxu0 0.0
        %1118 = vmatpush1.msra.mxu0 0.0
        %1119 = vmatprep.subr.mxu0 0.0
        %1120 = vmatpush1.msra.mxu0 0.0
        %1121 = vmatprep.subr.mxu0 0.0
        %1122 = vmatpush1.msra.mxu0 0.0
        %1123 = vmatprep.subr.mxu0 0.0
        %1124 = vmatpush1.msra.mxu0 0.0
        %1125 = vmatprep.subr.mxu0 0.0
        %1126 = vmatpush1.msra.mxu0 0.0
        %1127 = vmatprep.subr.mxu0 0.0
        %1128 = vmatpush1.msra.mxu0 0.0
        %1129 = vmatprep.subr.mxu0 0.0
        %1130 = vmatpush1.msra.mxu0 0.0
        %1131 = vmatprep.subr.mxu0 0.0
        %1132 = vmatpush1.msra.mxu0 0.0
        %1133 = vmatprep.subr.mxu0 0.0
        %1134 = vmatpush1.msra.mxu0 0.0
        %1135 = vmatprep.subr.mxu0 0.0
        %1136 = vmatpush1.msra.mxu0 0.0
        %1137 = vmatprep.subr.mxu0 0.0
        %1138 = vmatpush1.msra.mxu0 0.0
        %1139 = vmatprep.subr.mxu0 0.0
        %1140 = vmatpush1.msra.mxu0 0.0
        %1141 = vmatprep.subr.mxu0 0.0
        %1142 = vmatpush1.msra.mxu0 0.0
        %1143 = vmatprep.subr.mxu0 0.0
        %1144 = vmatpush1.msra.mxu0 0.0
        %1145 = vmatprep.subr.mxu0 0.0
        %1146 = vmatpush1.msra.mxu0 0.0
        %1147 = vmatprep.subr.mxu0 0.0
        %1148 = vmatpush1.msra.mxu0 0.0
        %1149 = vmatprep.subr.mxu0 0.0
        %1150 = vmatpush1.msra.mxu0 0.0
        %1151 = vmatprep.subr.mxu0 0.0
        %1152 = vmatpush1.msra.mxu0 0.0
        %1153 = vmatprep.subr.mxu0 0.0
        %1154 = vmatpush1.msra.mxu0 0.0
        %1155 = vmatprep.subr.mxu0 0.0
        %1156 = vmatpush1.msra.mxu0 0.0
        %1157 = vmatprep.subr.mxu0 0.0
        %1158 = vmatpush1.msra.mxu0 0.0
        %1159 = vmatprep.subr.mxu0 0.0
        %1160 = vmatpush1.msra.mxu0 0.0
        %1161 = vmatprep.subr.mxu0 0.0
        %1162 = vmatpush1.msra.mxu0 0.0
        %1163 = vmatprep.subr.mxu0 0.0
        %1164 = vmatpush1.msra.mxu0 0.0
        %1165 = vmatprep.mubr.f32.mxu0 0.0
        %1166 = vmatmul.mubr.f32.gmra.mrb[0].mxu0 %v1054
        %v1167 = vpop.f32.mrb[0].mxu0
        %v1168 = vadd.f32 %v1050, %v1167
        %v1169 = vpop.f32.mrb[0].mxu0
        %1170 = vmatprep.mubr.f32.mxu0 0.0
        %1171 = vmatmul.mubr.f32.gmra.mrb[0].mxu0 %v1057
        %v1172 = vpop.f32.mrb[0].mxu0
        %v1173 = vadd.f32 %v1050, %v1172
        %v1174 = vpop.f32.mrb[0].mxu0
        %1175 = vmatprep.mubr.f32.mxu0 0.0
        %1176 = vmatmul.mubr.f32.gmra.mrb[0].mxu0 %v1060
        %v1177 = vpop.f32.mrb[0].mxu0
        %v1178 = vadd.f32 %v1050, %v1177
        %v1179 = vpop.f32.mrb[0].mxu0
        %1180 = vmatprep.mubr.f32.mxu0 0.0
        %1181 = vmatmul.mubr.f32.gmra.mrb[0].mxu0 %v1063
        %v1182 = vpop.f32.mrb[0].mxu0
        %v1183 = vadd.f32 %v1050, %v1182
        %v1184 = vpop.f32.mrb[0].mxu0
        %1185 = vmatprep.mubr.f32.mxu0 0.0
        %1186 = vmatmul.mubr.f32.gmra.mrb[0].mxu0 %v1066
        %v1187 = vpop.f32.mrb[0].mxu0
        %v1188 = vadd.f32 %v1050, %v1187
        %v1189 = vpop.f32.mrb[0].mxu0
        %1190 = vmatprep.mubr.f32.mxu0 0.0
        %1191 = vmatmul.mubr.f32.gmra.mrb[0].mxu0 %v1069
        %v1192 = vpop.f32.mrb[0].mxu0
        %v1193 = vadd.f32 %v1050, %v1192
        %v1194 = vpop.f32.mrb[0].mxu0
        %1195 = vmatprep.mubr.f32.mxu0 0.0
        %1196 = vmatmul.mubr.f32.gmra.mrb[0].mxu0 %v1072
        %v1197 = vpop.f32.mrb[0].mxu0
        %v1198 = vadd.f32 %v1050, %v1197
        %v1199 = vpop.f32.mrb[0].mxu0
        %1200 = vmatprep.mubr.f32.mxu0 0.0
        %1201 = vmatmul.mubr.f32.gmra.mrb[0].mxu0 %v1075
        %v1202 = vpop.f32.mrb[0].mxu0
        %v1203 = vadd.f32 %v1050, %v1202
        %v1204 = vpop.f32.mrb[0].mxu0
        %1205 = vmatprep.mubr.f32.mxu0 0.0
        %1206 = vmatmul.mubr.f32.gmra.mrb[0].mxu0 %v1078
        %v1207 = vpop.f32.mrb[0].mxu0
        %v1208 = vadd.f32 %v1050, %v1207
        %v1209 = vpop.f32.mrb[0].mxu0
        %1210 = vmatprep.mubr.f32.mxu0 0.0
        %1211 = vmatmul.mubr.f32.gmra.mrb[0].mxu0 %v1081
        %v1212 = vpop.f32.mrb[0].mxu0
        %v1213 = vadd.f32 %v1050, %v1212
        %v1214 = vpop.f32.mrb[0].mxu0
        %1215 = vmatprep.mubr.f32.mxu0 0.0
        %1216 = vmatmul.mubr.f32.gmra.mrb[0].mxu0 %v1084
        %v1217 = vpop.f32.mrb[0].mxu0
        %v1218 = vadd.f32 %v1050, %v1217
        %v1219 = vpop.f32.mrb[0].mxu0
        %1220 = vmatprep.mubr.f32.mxu0 0.0
        %1221 = vmatmul.mubr.f32.gmra.mrb[0].mxu0 %v1087
        %v1222 = vpop.f32.mrb[0].mxu0
        %v1223 = vadd.f32 %v1050, %v1222
        %v1224 = vpop.f32.mrb[0].mxu0
        %1225 = vmatprep.mubr.f32.mxu0 0.0
        %1226 = vmatmul.mubr.f32.gmra.mrb[0].mxu0 %v1090
        %v1227 = vpop.f32.mrb[0].mxu0
        %v1228 = vadd.f32 %v1050, %v1227
        %v1229 = vpop.f32.mrb[0].mxu0
        %1230 = vmatprep.mubr.f32.mxu0 0.0
        %1231 = vmatmul.mubr.f32.gmra.mrb[0].mxu0 %v1093
        %v1232 = vpop.f32.mrb[0].mxu0
        %v1233 = vadd.f32 %v1050, %v1232
        %v1234 = vpop.f32.mrb[0].mxu0
        %1235 = vmatprep.mubr.f32.mxu0 0.0
        %1236 = vmatmul.mubr.f32.gmra.mrb[0].mxu0 %v1096
        %v1237 = vpop.f32.mrb[0].mxu0
        %v1238 = vadd.f32 %v1050, %v1237
        %v1239 = vpop.f32.mrb[0].mxu0
        %1240 = vmatprep.mubr.f32.mxu0 0.0
        %1241 = vmatmul.mubr.f32.gmra.mrb[0].mxu0 %v1099
        %v1242 = vpop.f32.mrb[0].mxu0
        %v1243 = vadd.f32 %v1050, %v1242
        %v1244 = vpop.f32.mrb[0].mxu0
        %1245 = vdwg.mxu0
        %v1246 = vld [vmem:[#allocation2] sm:$0xff]
        %v1247 = vld [vmem:[#allocation2 + $0x8] sm:$0xff]
        %v1248 = vld [vmem:[#allocation2 + $0x10] sm:$0xff]
        %v1249 = vld [vmem:[#allocation2 + $0x18] sm:$0xff]
        %v1250 = vld [vmem:[#allocation2 + $0x20] sm:$0xff]
        %v1251 = vld [vmem:[#allocation2 + $0x28] sm:$0xff]
        %v1252 = vld [vmem:[#allocation2 + $0x30] sm:$0xff]
        %v1253 = vld [vmem:[#allocation2 + $0x38] sm:$0xff]
        %v1254 = vld [vmem:[#allocation2 + $0x40] sm:$0xff]
        %v1255 = vld [vmem:[#allocation2 + $0x48] sm:$0xff]
        %v1256 = vld [vmem:[#allocation2 + $0x50] sm:$0xff]
        %v1257 = vld [vmem:[#allocation2 + $0x58] sm:$0xff]
        %v1258 = vld [vmem:[#allocation2 + $0x60] sm:$0xff]
        %v1259 = vld [vmem:[#allocation2 + $0x68] sm:$0xff]
        %v1260 = vld [vmem:[#allocation2 + $0x70] sm:$0xff]
        %v1261 = vld [vmem:[#allocation2 + $0x78] sm:$0xff]
        %v1262 = vld [vmem:[#allocation2 + $0x80] sm:$0xff]
        %v1263 = vld [vmem:[#allocation2 + $0x88] sm:$0xff]
        %v1264 = vld [vmem:[#allocation2 + $0x90] sm:$0xff]
        %v1265 = vld [vmem:[#allocation2 + $0x98] sm:$0xff]
        %v1266 = vld [vmem:[#allocation2 + $0xa0] sm:$0xff]
        %v1267 = vld [vmem:[#allocation2 + $0xa8] sm:$0xff]
        %v1268 = vld [vmem:[#allocation2 + $0xb0] sm:$0xff]
        %v1269 = vld [vmem:[#allocation2 + $0xb8] sm:$0xff]
        %v1270 = vld [vmem:[#allocation2 + $0xc0] sm:$0xff]
        %v1271 = vld [vmem:[#allocation2 + $0xc8] sm:$0xff]
        %v1272 = vld [vmem:[#allocation2 + $0xd0] sm:$0xff]
        %v1273 = vld [vmem:[#allocation2 + $0xd8] sm:$0xff]
        %v1274 = vld [vmem:[#allocation2 + $0xe0] sm:$0xff]
        %v1275 = vld [vmem:[#allocation2 + $0xe8] sm:$0xff]
        %v1276 = vld [vmem:[#allocation2 + $0xf0] sm:$0xff]
        %v1277 = vld [vmem:[#allocation2 + $0xf8] sm:$0xff]
        %vm1278 = vcmask 64512
        %v1280 = vsel %vm1278, %v1168, 0
        %v1283 = vsel %vm1278, %v1173, 0
        %v1286 = vsel %vm1278, %v1178, 0
        %v1289 = vsel %vm1278, %v1183, 0
        %v1292 = vsel %vm1278, %v1188, 0
        %v1295 = vsel %vm1278, %v1193, 0
        %v1298 = vsel %vm1278, %v1198, 0
        %v1301 = vsel %vm1278, %v1203, 0
        %v1304 = vsel %vm1278, %v1208, 0
        %v1307 = vsel %vm1278, %v1213, 0
        %v1310 = vsel %vm1278, %v1218, 0
        %v1313 = vsel %vm1278, %v1223, 0
        %v1316 = vsel %vm1278, %v1228, 0
        %v1319 = vsel %vm1278, %v1233, 0
        %v1322 = vsel %vm1278, %v1238, 0
        %v1325 = vsel %vm1278, %v1243, 0
        %v1328 = vsel %vm1278, %v1246, 0
        %v1331 = vsel %vm1278, %v1247, 0
        %v1334 = vsel %vm1278, %v1248, 0
        %v1337 = vsel %vm1278, %v1249, 0
        %v1340 = vsel %vm1278, %v1250, 0
        %v1343 = vsel %vm1278, %v1251, 0
        %v1346 = vsel %vm1278, %v1252, 0
        %v1349 = vsel %vm1278, %v1253, 0
        %v1352 = vsel %vm1278, %v1254, 0
        %v1355 = vsel %vm1278, %v1255, 0
        %v1358 = vsel %vm1278, %v1256, 0
        %v1361 = vsel %vm1278, %v1257, 0
        %v1364 = vsel %vm1278, %v1258, 0
        %v1367 = vsel %vm1278, %v1259, 0
        %v1370 = vsel %vm1278, %v1260, 0
        %v1373 = vsel %vm1278, %v1261, 0
        %v1376 = vsel %vm1278, %v1262, 0
        %v1379 = vsel %vm1278, %v1263, 0
        %v1382 = vsel %vm1278, %v1264, 0
        %v1385 = vsel %vm1278, %v1265, 0
        %v1388 = vsel %vm1278, %v1266, 0
        %v1391 = vsel %vm1278, %v1267, 0
        %v1394 = vsel %vm1278, %v1268, 0
        %v1397 = vsel %vm1278, %v1269, 0
        %v1400 = vsel %vm1278, %v1270, 0
        %v1403 = vsel %vm1278, %v1271, 0
        %v1406 = vsel %vm1278, %v1272, 0
        %v1409 = vsel %vm1278, %v1273, 0
        %v1412 = vsel %vm1278, %v1274, 0
        %v1415 = vsel %vm1278, %v1275, 0
        %v1418 = vsel %vm1278, %v1276, 0
        %v1421 = vsel %vm1278, %v1277, 0
        %1423 = vmatprep.subr.mxu0 0.0
        %1424 = vmatpush1.xpose.msra.mxu0 %v1328
        %1425 = vmatprep.subr.mxu0 0.0
        %1426 = vmatpush1.xpose.msra.mxu0 %v1331
        %1427 = vmatprep.subr.mxu0 0.0
        %1428 = vmatpush1.xpose.msra.mxu0 %v1334
        %1429 = vmatprep.subr.mxu0 0.0
        %1430 = vmatpush1.xpose.msra.mxu0 %v1337
        %1431 = vmatprep.subr.mxu0 0.0
        %1432 = vmatpush1.xpose.msra.mxu0 %v1340
        %1433 = vmatprep.subr.mxu0 0.0
        %1434 = vmatpush1.xpose.msra.mxu0 %v1343
        %1435 = vmatprep.subr.mxu0 0.0
        %1436 = vmatpush1.xpose.msra.mxu0 %v1346
        %1437 = vmatprep.subr.mxu0 0.0
        %1438 = vmatpush1.xpose.msra.mxu0 %v1349
        %1439 = vmatprep.subr.mxu0 0.0
        %1440 = vmatpush1.xpose.msra.mxu0 %v1352
        %1441 = vmatprep.subr.mxu0 0.0
        %1442 = vmatpush1.xpose.msra.mxu0 %v1355
        %1443 = vmatprep.subr.mxu0 0.0
        %1444 = vmatpush1.xpose.msra.mxu0 %v1358
        %1445 = vmatprep.subr.mxu0 0.0
        %1446 = vmatpush1.xpose.msra.mxu0 %v1361
        %1447 = vmatprep.subr.mxu0 0.0
        %1448 = vmatpush1.xpose.msra.mxu0 %v1364
        %1449 = vmatprep.subr.mxu0 0.0
        %1450 = vmatpush1.xpose.msra.mxu0 %v1367
        %1451 = vmatprep.subr.mxu0 0.0
        %1452 = vmatpush1.xpose.msra.mxu0 %v1370
        %1453 = vmatprep.subr.mxu0 0.0
        %1454 = vmatpush1.xpose.msra.mxu0 %v1373
        %1455 = vmatprep.subr.mxu0 0.0
        %1456 = vmatpush1.xpose.msra.mxu0 %v1376
        %1457 = vmatprep.subr.mxu0 0.0
        %1458 = vmatpush1.xpose.msra.mxu0 %v1379
        %1459 = vmatprep.subr.mxu0 0.0
        %1460 = vmatpush1.xpose.msra.mxu0 %v1382
        %1461 = vmatprep.subr.mxu0 0.0
        %1462 = vmatpush1.xpose.msra.mxu0 %v1385
        %1463 = vmatprep.subr.mxu0 0.0
        %1464 = vmatpush1.xpose.msra.mxu0 %v1388
        %1465 = vmatprep.subr.mxu0 0.0
        %1466 = vmatpush1.xpose.msra.mxu0 %v1391
        %1467 = vmatprep.subr.mxu0 0.0
        %1468 = vmatpush1.xpose.msra.mxu0 %v1394
        %1469 = vmatprep.subr.mxu0 0.0
        %1470 = vmatpush1.xpose.msra.mxu0 %v1397
        %1471 = vmatprep.subr.mxu0 0.0
        %1472 = vmatpush1.xpose.msra.mxu0 %v1400
        %1473 = vmatprep.subr.mxu0 0.0
        %1474 = vmatpush1.xpose.msra.mxu0 %v1403
        %1475 = vmatprep.subr.mxu0 0.0
        %1476 = vmatpush1.xpose.msra.mxu0 %v1406
        %1477 = vmatprep.subr.mxu0 0.0
        %1478 = vmatpush1.xpose.msra.mxu0 %v1409
        %1479 = vmatprep.subr.mxu0 0.0
        %1480 = vmatpush1.xpose.msra.mxu0 %v1412
        %1481 = vmatprep.subr.mxu0 0.0
        %1482 = vmatpush1.xpose.msra.mxu0 %v1415
        %1483 = vmatprep.subr.mxu0 0.0
        %1484 = vmatpush1.xpose.msra.mxu0 %v1418
        %1485 = vmatprep.subr.mxu0 0.0
        %1486 = vmatpush1.xpose.msra.mxu0 %v1421
        %1487 = vmatprep.mubr.f32.mxu0 0.0
        %1488 = vmatmul.mubr.f32.gmra.mrb[0].mxu0 %v1280
        %v1489 = vpop.f32.mrb[0].mxu0
        %v1490 = vadd.f32 0.0, %v1489
        %v1491 = vpop.f32.mrb[0].mxu0
        %v1492 = vadd.f32 0.0, %v1491
        %1493 = vmatprep.mubr.f32.mxu0 0.0
        %1494 = vmatmul.mubr.f32.gmra.mrb[0].mxu0 %v1283
        %v1495 = vpop.f32.mrb[0].mxu0
        %v1496 = vadd.f32 0.0, %v1495
        %v1497 = vpop.f32.mrb[0].mxu0
        %v1498 = vadd.f32 0.0, %v1497
        %1499 = vmatprep.mubr.f32.mxu0 0.0
        %1500 = vmatmul.mubr.f32.gmra.mrb[0].mxu0 %v1286
        %v1501 = vpop.f32.mrb[0].mxu0
        %v1502 = vadd.f32 0.0, %v1501
        %v1503 = vpop.f32.mrb[0].mxu0
        %v1504 = vadd.f32 0.0, %v1503
        %1505 = vmatprep.mubr.f32.mxu0 0.0
        %1506 = vmatmul.mubr.f32.gmra.mrb[0].mxu0 %v1289
        %v1507 = vpop.f32.mrb[0].mxu0
        %v1508 = vadd.f32 0.0, %v1507
        %v1509 = vpop.f32.mrb[0].mxu0
        %v1510 = vadd.f32 0.0, %v1509
        %1511 = vmatprep.mubr.f32.mxu0 0.0
        %1512 = vmatmul.mubr.f32.gmra.mrb[0].mxu0 %v1292
        %v1513 = vpop.f32.mrb[0].mxu0
        %v1514 = vadd.f32 0.0, %v1513
        %v1515 = vpop.f32.mrb[0].mxu0
        %v1516 = vadd.f32 0.0, %v1515
        %1517 = vmatprep.mubr.f32.mxu0 0.0
        %1518 = vmatmul.mubr.f32.gmra.mrb[0].mxu0 %v1295
        %v1519 = vpop.f32.mrb[0].mxu0
        %v1520 = vadd.f32 0.0, %v1519
        %v1521 = vpop.f32.mrb[0].mxu0
        %v1522 = vadd.f32 0.0, %v1521
        %1523 = vmatprep.mubr.f32.mxu0 0.0
        %1524 = vmatmul.mubr.f32.gmra.mrb[0].mxu0 %v1298
        %v1525 = vpop.f32.mrb[0].mxu0
        %v1526 = vadd.f32 0.0, %v1525
        %v1527 = vpop.f32.mrb[0].mxu0
        %v1528 = vadd.f32 0.0, %v1527
        %1529 = vmatprep.mubr.f32.mxu0 0.0
        %1530 = vmatmul.mubr.f32.gmra.mrb[0].mxu0 %v1301
        %v1531 = vpop.f32.mrb[0].mxu0
        %v1532 = vadd.f32 0.0, %v1531
        %v1533 = vpop.f32.mrb[0].mxu0
        %v1534 = vadd.f32 0.0, %v1533
        %1535 = vmatprep.mubr.f32.mxu0 0.0
        %1536 = vmatmul.mubr.f32.gmra.mrb[0].mxu0 %v1304
        %v1537 = vpop.f32.mrb[0].mxu0
        %v1538 = vadd.f32 0.0, %v1537
        %v1539 = vpop.f32.mrb[0].mxu0
        %v1540 = vadd.f32 0.0, %v1539
        %1541 = vmatprep.mubr.f32.mxu0 0.0
        %1542 = vmatmul.mubr.f32.gmra.mrb[0].mxu0 %v1307
        %v1543 = vpop.f32.mrb[0].mxu0
        %v1544 = vadd.f32 0.0, %v1543
        %v1545 = vpop.f32.mrb[0].mxu0
        %v1546 = vadd.f32 0.0, %v1545
        %1547 = vmatprep.mubr.f32.mxu0 0.0
        %1548 = vmatmul.mubr.f32.gmra.mrb[0].mxu0 %v1310
        %v1549 = vpop.f32.mrb[0].mxu0
        %v1550 = vadd.f32 0.0, %v1549
        %v1551 = vpop.f32.mrb[0].mxu0
        %v1552 = vadd.f32 0.0, %v1551
        %1553 = vmatprep.mubr.f32.mxu0 0.0
        %1554 = vmatmul.mubr.f32.gmra.mrb[0].mxu0 %v1313
        %v1555 = vpop.f32.mrb[0].mxu0
        %v1556 = vadd.f32 0.0, %v1555
        %v1557 = vpop.f32.mrb[0].mxu0
        %v1558 = vadd.f32 0.0, %v1557
        %1559 = vmatprep.mubr.f32.mxu0 0.0
        %1560 = vmatmul.mubr.f32.gmra.mrb[0].mxu0 %v1316
        %v1561 = vpop.f32.mrb[0].mxu0
        %v1562 = vadd.f32 0.0, %v1561
        %v1563 = vpop.f32.mrb[0].mxu0
        %v1564 = vadd.f32 0.0, %v1563
        %1565 = vmatprep.mubr.f32.mxu0 0.0
        %1566 = vmatmul.mubr.f32.gmra.mrb[0].mxu0 %v1319
        %v1567 = vpop.f32.mrb[0].mxu0
        %v1568 = vadd.f32 0.0, %v1567
        %v1569 = vpop.f32.mrb[0].mxu0
        %v1570 = vadd.f32 0.0, %v1569
        %1571 = vmatprep.mubr.f32.mxu0 0.0
        %1572 = vmatmul.mubr.f32.gmra.mrb[0].mxu0 %v1322
        %v1573 = vpop.f32.mrb[0].mxu0
        %v1574 = vadd.f32 0.0, %v1573
        %v1575 = vpop.f32.mrb[0].mxu0
        %v1576 = vadd.f32 0.0, %v1575
        %1577 = vmatprep.mubr.f32.mxu0 0.0
        %1578 = vmatmul.mubr.f32.gmra.mrb[0].mxu0 %v1325
        %v1579 = vpop.f32.mrb[0].mxu0
        %v1580 = vadd.f32 0.0, %v1579
        %v1581 = vpop.f32.mrb[0].mxu0
        %v1582 = vadd.f32 0.0, %v1581
        %1583 = vdwg.mxu0
        %v1584 = vmax.f32 %v1490, %v1492
        %1585 = vmax.xlane.f32.xlu0 %v1584
        %v1586 = vpop.xlane.xlu0 %1585
        %v1587 = vmax.f32 %v1496, %v1498
        %1588 = vmax.xlane.f32.xlu0 %v1587
        %v1589 = vpop.xlane.xlu0 %1588
        %v1590 = vmax.f32 %v1502, %v1504
        %1591 = vmax.xlane.f32.xlu0 %v1590
        %v1592 = vpop.xlane.xlu0 %1591
        %v1593 = vmax.f32 %v1508, %v1510
        %1594 = vmax.xlane.f32.xlu0 %v1593
        %v1595 = vpop.xlane.xlu0 %1594
        %v1596 = vmax.f32 %v1514, %v1516
        %1597 = vmax.xlane.f32.xlu0 %v1596
        %v1598 = vpop.xlane.xlu0 %1597
        %v1599 = vmax.f32 %v1520, %v1522
        %1600 = vmax.xlane.f32.xlu0 %v1599
        %v1601 = vpop.xlane.xlu0 %1600
        %v1602 = vmax.f32 %v1526, %v1528
        %1603 = vmax.xlane.f32.xlu0 %v1602
        %v1604 = vpop.xlane.xlu0 %1603
        %v1605 = vmax.f32 %v1532, %v1534
        %1606 = vmax.xlane.f32.xlu0 %v1605
        %v1607 = vpop.xlane.xlu0 %1606
        %v1608 = vmax.f32 %v1538, %v1540
        %1609 = vmax.xlane.f32.xlu0 %v1608
        %v1610 = vpop.xlane.xlu0 %1609
        %v1611 = vmax.f32 %v1544, %v1546
        %1612 = vmax.xlane.f32.xlu0 %v1611
        %v1613 = vpop.xlane.xlu0 %1612
        %v1614 = vmax.f32 %v1550, %v1552
        %1615 = vmax.xlane.f32.xlu0 %v1614
        %v1616 = vpop.xlane.xlu0 %1615
        %v1617 = vmax.f32 %v1556, %v1558
        %1618 = vmax.xlane.f32.xlu0 %v1617
        %v1619 = vpop.xlane.xlu0 %1618
        %v1620 = vmax.f32 %v1562, %v1564
        %1621 = vmax.xlane.f32.xlu0 %v1620
        %v1622 = vpop.xlane.xlu0 %1621
        %v1623 = vmax.f32 %v1568, %v1570
        %1624 = vmax.xlane.f32.xlu0 %v1623
        %v1625 = vpop.xlane.xlu0 %1624
        %v1626 = vmax.f32 %v1574, %v1576
        %1627 = vmax.xlane.f32.xlu0 %v1626
        %v1628 = vpop.xlane.xlu0 %1627
        %v1629 = vmax.f32 %v1580, %v1582
        %1630 = vmax.xlane.f32.xlu0 %v1629
        %v1631 = vpop.xlane.xlu0 %1630
        %v1632 = vsub.f32 %v1490, %v1586
        %v1633 = vsub.f32 %v1492, %v1586
        %v1634 = vsub.f32 %v1496, %v1589
        %v1635 = vsub.f32 %v1498, %v1589
        %v1636 = vsub.f32 %v1502, %v1592
        %v1637 = vsub.f32 %v1504, %v1592
        %v1638 = vsub.f32 %v1508, %v1595
        %v1639 = vsub.f32 %v1510, %v1595
        %v1640 = vsub.f32 %v1514, %v1598
        %v1641 = vsub.f32 %v1516, %v1598
        %v1642 = vsub.f32 %v1520, %v1601
        %v1643 = vsub.f32 %v1522, %v1601
        %v1644 = vsub.f32 %v1526, %v1604
        %v1645 = vsub.f32 %v1528, %v1604
        %v1646 = vsub.f32 %v1532, %v1607
        %v1647 = vsub.f32 %v1534, %v1607
        %v1648 = vsub.f32 %v1538, %v1610
        %v1649 = vsub.f32 %v1540, %v1610
        %v1650 = vsub.f32 %v1544, %v1613
        %v1651 = vsub.f32 %v1546, %v1613
        %v1652 = vsub.f32 %v1550, %v1616
        %v1653 = vsub.f32 %v1552, %v1616
        %v1654 = vsub.f32 %v1556, %v1619
        %v1655 = vsub.f32 %v1558, %v1619
        %v1656 = vsub.f32 %v1562, %v1622
        %v1657 = vsub.f32 %v1564, %v1622
        %v1658 = vsub.f32 %v1568, %v1625
        %v1659 = vsub.f32 %v1570, %v1625
        %v1660 = vsub.f32 %v1574, %v1628
        %v1661 = vsub.f32 %v1576, %v1628
        %v1662 = vsub.f32 %v1580, %v1631
        %v1663 = vsub.f32 %v1582, %v1631
        %v1664 = vmul.f32 %v1632, 1.442695
        %v1665 = vpow.pop %v1664
        %v1666 = vmul.f32 %v1633, 1.442695
        %v1667 = vpow.pop %v1666
        %v1668 = vmul.f32 %v1634, 1.442695
        %v1669 = vpow.pop %v1668
        %v1670 = vmul.f32 %v1635, 1.442695
        %v1671 = vpow.pop %v1670
        %v1672 = vmul.f32 %v1636, 1.442695
        %v1673 = vpow.pop %v1672
        %v1674 = vmul.f32 %v1637, 1.442695
        %v1675 = vpow.pop %v1674
        %v1676 = vmul.f32 %v1638, 1.442695
        %v1677 = vpow.pop %v1676
        %v1678 = vmul.f32 %v1639, 1.442695
        %v1679 = vpow.pop %v1678
        %v1680 = vmul.f32 %v1640, 1.442695
        %v1681 = vpow.pop %v1680
        %v1682 = vmul.f32 %v1641, 1.442695
        %v1683 = vpow.pop %v1682
        %v1684 = vmul.f32 %v1642, 1.442695
        %v1685 = vpow.pop %v1684
        %v1686 = vmul.f32 %v1643, 1.442695
        %v1687 = vpow.pop %v1686
        %v1688 = vmul.f32 %v1644, 1.442695
        %v1689 = vpow.pop %v1688
        %v1690 = vmul.f32 %v1645, 1.442695
        %v1691 = vpow.pop %v1690
        %v1692 = vmul.f32 %v1646, 1.442695
        %v1693 = vpow.pop %v1692
        %v1694 = vmul.f32 %v1647, 1.442695
        %v1695 = vpow.pop %v1694
        %v1696 = vmul.f32 %v1648, 1.442695
        %v1697 = vpow.pop %v1696
        %v1698 = vmul.f32 %v1649, 1.442695
        %v1699 = vpow.pop %v1698
        %v1700 = vmul.f32 %v1650, 1.442695
        %v1701 = vpow.pop %v1700
        %v1702 = vmul.f32 %v1651, 1.442695
        %v1703 = vpow.pop %v1702
        %v1704 = vmul.f32 %v1652, 1.442695
        %v1705 = vpow.pop %v1704
        %v1706 = vmul.f32 %v1653, 1.442695
        %v1707 = vpow.pop %v1706
        %v1708 = vmul.f32 %v1654, 1.442695
        %v1709 = vpow.pop %v1708
        %v1710 = vmul.f32 %v1655, 1.442695
        %v1711 = vpow.pop %v1710
        %v1712 = vmul.f32 %v1656, 1.442695
        %v1713 = vpow.pop %v1712
        %v1714 = vmul.f32 %v1657, 1.442695
        %v1715 = vpow.pop %v1714
        %v1716 = vmul.f32 %v1658, 1.442695
        %v1717 = vpow.pop %v1716
        %v1718 = vmul.f32 %v1659, 1.442695
        %v1719 = vpow.pop %v1718
        %v1720 = vmul.f32 %v1660, 1.442695
        %v1721 = vpow.pop %v1720
        %v1722 = vmul.f32 %v1661, 1.442695
        %v1723 = vpow.pop %v1722
        %v1724 = vmul.f32 %v1662, 1.442695
        %v1725 = vpow.pop %v1724
        %v1726 = vmul.f32 %v1663, 1.442695
        %v1727 = vpow.pop %v1726
        %v1728 = vadd.f32 %v1665, %v1667
        %1729 = vadd.xlane.f32.xlu0 %v1728
        %v1730 = vpop.xlane.xlu0 %1729
        %v1731 = vadd.f32 %v1669, %v1671
        %1732 = vadd.xlane.f32.xlu0 %v1731
        %v1733 = vpop.xlane.xlu0 %1732
        %v1734 = vadd.f32 %v1673, %v1675
        %1735 = vadd.xlane.f32.xlu0 %v1734
        %v1736 = vpop.xlane.xlu0 %1735
        %v1737 = vadd.f32 %v1677, %v1679
        %1738 = vadd.xlane.f32.xlu0 %v1737
        %v1739 = vpop.xlane.xlu0 %1738
        %v1740 = vadd.f32 %v1681, %v1683
        %1741 = vadd.xlane.f32.xlu0 %v1740
        %v1742 = vpop.xlane.xlu0 %1741
        %v1743 = vadd.f32 %v1685, %v1687
        %1744 = vadd.xlane.f32.xlu0 %v1743
        %v1745 = vpop.xlane.xlu0 %1744
        %v1746 = vadd.f32 %v1689, %v1691
        %1747 = vadd.xlane.f32.xlu0 %v1746
        %v1748 = vpop.xlane.xlu0 %1747
        %v1749 = vadd.f32 %v1693, %v1695
        %1750 = vadd.xlane.f32.xlu0 %v1749
        %v1751 = vpop.xlane.xlu0 %1750
        %v1752 = vadd.f32 %v1697, %v1699
        %1753 = vadd.xlane.f32.xlu0 %v1752
        %v1754 = vpop.xlane.xlu0 %1753
        %v1755 = vadd.f32 %v1701, %v1703
        %1756 = vadd.xlane.f32.xlu0 %v1755
        %v1757 = vpop.xlane.xlu0 %1756
        %v1758 = vadd.f32 %v1705, %v1707
        %1759 = vadd.xlane.f32.xlu0 %v1758
        %v1760 = vpop.xlane.xlu0 %1759
        %v1761 = vadd.f32 %v1709, %v1711
        %1762 = vadd.xlane.f32.xlu0 %v1761
        %v1763 = vpop.xlane.xlu0 %1762
        %v1764 = vadd.f32 %v1713, %v1715
        %1765 = vadd.xlane.f32.xlu0 %v1764
        %v1766 = vpop.xlane.xlu0 %1765
        %v1767 = vadd.f32 %v1717, %v1719
        %1768 = vadd.xlane.f32.xlu0 %v1767
        %v1769 = vpop.xlane.xlu0 %1768
        %v1770 = vadd.f32 %v1721, %v1723
        %1771 = vadd.xlane.f32.xlu0 %v1770
        %v1772 = vpop.xlane.xlu0 %1771
        %v1773 = vadd.f32 %v1725, %v1727
        %1774 = vadd.xlane.f32.xlu0 %v1773
        %v1775 = vpop.xlane.xlu0 %1774
        %v1776 = vrcp.pop %v1730
        %v1777 = vmul.f32 %v1665, %v1776
        %v1778 = vmul.f32 %v1667, %v1776
        %v1779 = vrcp.pop %v1733
        %v1780 = vmul.f32 %v1669, %v1779
        %v1781 = vmul.f32 %v1671, %v1779
        %v1782 = vrcp.pop %v1736
        %v1783 = vmul.f32 %v1673, %v1782
        %v1784 = vmul.f32 %v1675, %v1782
        %v1785 = vrcp.pop %v1739
        %v1786 = vmul.f32 %v1677, %v1785
        %v1787 = vmul.f32 %v1679, %v1785
        %v1788 = vrcp.pop %v1742
        %v1789 = vmul.f32 %v1681, %v1788
        %v1790 = vmul.f32 %v1683, %v1788
        %v1791 = vrcp.pop %v1745
        %v1792 = vmul.f32 %v1685, %v1791
        %v1793 = vmul.f32 %v1687, %v1791
        %v1794 = vrcp.pop %v1748
        %v1795 = vmul.f32 %v1689, %v1794
        %v1796 = vmul.f32 %v1691, %v1794
        %v1797 = vrcp.pop %v1751
        %v1798 = vmul.f32 %v1693, %v1797
        %v1799 = vmul.f32 %v1695, %v1797
        %v1800 = vrcp.pop %v1754
        %v1801 = vmul.f32 %v1697, %v1800
        %v1802 = vmul.f32 %v1699, %v1800
        %v1803 = vrcp.pop %v1757
        %v1804 = vmul.f32 %v1701, %v1803
        %v1805 = vmul.f32 %v1703, %v1803
        %v1806 = vrcp.pop %v1760
        %v1807 = vmul.f32 %v1705, %v1806
        %v1808 = vmul.f32 %v1707, %v1806
        %v1809 = vrcp.pop %v1763
        %v1810 = vmul.f32 %v1709, %v1809
        %v1811 = vmul.f32 %v1711, %v1809
        %v1812 = vrcp.pop %v1766
        %v1813 = vmul.f32 %v1713, %v1812
        %v1814 = vmul.f32 %v1715, %v1812
        %v1815 = vrcp.pop %v1769
        %v1816 = vmul.f32 %v1717, %v1815
        %v1817 = vmul.f32 %v1719, %v1815
        %v1818 = vrcp.pop %v1772
        %v1819 = vmul.f32 %v1721, %v1818
        %v1820 = vmul.f32 %v1723, %v1818
        %v1821 = vrcp.pop %v1775
        %v1822 = vmul.f32 %v1725, %v1821
        %v1823 = vmul.f32 %v1727, %v1821
        %v1824 = vld [vmem:[#allocation3] sm:$0xff]
        %v1825 = vld [vmem:[#allocation3 + $0x8] sm:$0xff]
        %v1826 = vld [vmem:[#allocation3 + $0x10] sm:$0xff]
        %v1827 = vld [vmem:[#allocation3 + $0x18] sm:$0xff]
        %v1828 = vld [vmem:[#allocation3 + $0x20] sm:$0xff]
        %v1829 = vld [vmem:[#allocation3 + $0x28] sm:$0xff]
        %v1830 = vld [vmem:[#allocation3 + $0x30] sm:$0xff]
        %v1831 = vld [vmem:[#allocation3 + $0x38] sm:$0xff]
        %v1832 = vld [vmem:[#allocation3 + $0x40] sm:$0xff]
        %v1833 = vld [vmem:[#allocation3 + $0x48] sm:$0xff]
        %v1834 = vld [vmem:[#allocation3 + $0x50] sm:$0xff]
        %v1835 = vld [vmem:[#allocation3 + $0x58] sm:$0xff]
        %v1836 = vld [vmem:[#allocation3 + $0x60] sm:$0xff]
        %v1837 = vld [vmem:[#allocation3 + $0x68] sm:$0xff]
        %v1838 = vld [vmem:[#allocation3 + $0x70] sm:$0xff]
        %v1839 = vld [vmem:[#allocation3 + $0x78] sm:$0xff]
        %v1840 = vld [vmem:[#allocation3 + $0x80] sm:$0xff]
        %v1841 = vld [vmem:[#allocation3 + $0x88] sm:$0xff]
        %v1842 = vld [vmem:[#allocation3 + $0x90] sm:$0xff]
        %v1843 = vld [vmem:[#allocation3 + $0x98] sm:$0xff]
        %v1844 = vld [vmem:[#allocation3 + $0xa0] sm:$0xff]
        %v1845 = vld [vmem:[#allocation3 + $0xa8] sm:$0xff]
        %v1846 = vld [vmem:[#allocation3 + $0xb0] sm:$0xff]
        %v1847 = vld [vmem:[#allocation3 + $0xb8] sm:$0xff]
        %v1848 = vld [vmem:[#allocation3 + $0xc0] sm:$0xff]
        %v1849 = vld [vmem:[#allocation3 + $0xc8] sm:$0xff]
        %v1850 = vld [vmem:[#allocation3 + $0xd0] sm:$0xff]
        %v1851 = vld [vmem:[#allocation3 + $0xd8] sm:$0xff]
        %v1852 = vld [vmem:[#allocation3 + $0xe0] sm:$0xff]
        %v1853 = vld [vmem:[#allocation3 + $0xe8] sm:$0xff]
        %v1854 = vld [vmem:[#allocation3 + $0xf0] sm:$0xff]
        %v1855 = vld [vmem:[#allocation3 + $0xf8] sm:$0xff]
        %1856 = vmatprep.subr.mxu0 0.0
        %1857 = vmatpush1.msra.mxu0 %v1824
        %1858 = vmatprep.subr.mxu0 0.0
        %1859 = vmatpush1.msra.mxu0 %v1825
        %1860 = vmatprep.subr.mxu0 0.0
        %1861 = vmatpush1.msra.mxu0 %v1826
        %1862 = vmatprep.subr.mxu0 0.0
        %1863 = vmatpush1.msra.mxu0 %v1827
        %1864 = vmatprep.subr.mxu0 0.0
        %1865 = vmatpush1.msra.mxu0 %v1828
        %1866 = vmatprep.subr.mxu0 0.0
        %1867 = vmatpush1.msra.mxu0 %v1829
        %1868 = vmatprep.subr.mxu0 0.0
        %1869 = vmatpush1.msra.mxu0 %v1830
        %1870 = vmatprep.subr.mxu0 0.0
        %1871 = vmatpush1.msra.mxu0 %v1831
        %1872 = vmatprep.subr.mxu0 0.0
        %1873 = vmatpush1.msra.mxu0 %v1832
        %1874 = vmatprep.subr.mxu0 0.0
        %1875 = vmatpush1.msra.mxu0 %v1833
        %1876 = vmatprep.subr.mxu0 0.0
        %1877 = vmatpush1.msra.mxu0 %v1834
        %1878 = vmatprep.subr.mxu0 0.0
        %1879 = vmatpush1.msra.mxu0 %v1835
        %1880 = vmatprep.subr.mxu0 0.0
        %1881 = vmatpush1.msra.mxu0 %v1836
        %1882 = vmatprep.subr.mxu0 0.0
        %1883 = vmatpush1.msra.mxu0 %v1837
        %1884 = vmatprep.subr.mxu0 0.0
        %1885 = vmatpush1.msra.mxu0 %v1838
        %1886 = vmatprep.subr.mxu0 0.0
        %1887 = vmatpush1.msra.mxu0 %v1839
        %1888 = vmatprep.subr.mxu0 0.0
        %1889 = vmatpush1.msra.mxu0 %v1840
        %1890 = vmatprep.subr.mxu0 0.0
        %1891 = vmatpush1.msra.mxu0 %v1841
        %1892 = vmatprep.subr.mxu0 0.0
        %1893 = vmatpush1.msra.mxu0 %v1842
        %1894 = vmatprep.subr.mxu0 0.0
        %1895 = vmatpush1.msra.mxu0 %v1843
        %1896 = vmatprep.subr.mxu0 0.0
        %1897 = vmatpush1.msra.mxu0 %v1844
        %1898 = vmatprep.subr.mxu0 0.0
        %1899 = vmatpush1.msra.mxu0 %v1845
        %1900 = vmatprep.subr.mxu0 0.0
        %1901 = vmatpush1.msra.mxu0 %v1846
        %1902 = vmatprep.subr.mxu0 0.0
        %1903 = vmatpush1.msra.mxu0 %v1847
        %1904 = vmatprep.subr.mxu0 0.0
        %1905 = vmatpush1.msra.mxu0 %v1848
        %1906 = vmatprep.subr.mxu0 0.0
        %1907 = vmatpush1.msra.mxu0 %v1849
        %1908 = vmatprep.subr.mxu0 0.0
        %1909 = vmatpush1.msra.mxu0 %v1850
        %1910 = vmatprep.subr.mxu0 0.0
        %1911 = vmatpush1.msra.mxu0 %v1851
        %1912 = vmatprep.subr.mxu0 0.0
        %1913 = vmatpush1.msra.mxu0 %v1852
        %1914 = vmatprep.subr.mxu0 0.0
        %1915 = vmatpush1.msra.mxu0 %v1853
        %1916 = vmatprep.subr.mxu0 0.0
        %1917 = vmatpush1.msra.mxu0 %v1854
        %1918 = vmatprep.subr.mxu0 0.0
        %1919 = vmatpush1.msra.mxu0 %v1855
        %1920 = vmatprep.mubr.f32.mxu0 %v1778
        %1921 = vmatmul.mubr.f32.gmra.mrb[0].mxu0 %v1777
        %v1922 = vpop.f32.mrb[0].mxu0
        %v1923 = vadd.f32 0.0, %v1922
        %v1924 = vpop.f32.mrb[0].mxu0
        %1925 = vmatprep.mubr.f32.mxu0 %v1781
        %1926 = vmatmul.mubr.f32.gmra.mrb[0].mxu0 %v1780
        %v1927 = vpop.f32.mrb[0].mxu0
        %v1928 = vadd.f32 0.0, %v1927
        %v1929 = vpop.f32.mrb[0].mxu0
        %1930 = vmatprep.mubr.f32.mxu0 %v1784
        %1931 = vmatmul.mubr.f32.gmra.mrb[0].mxu0 %v1783
        %v1932 = vpop.f32.mrb[0].mxu0
        %v1933 = vadd.f32 0.0, %v1932
        %v1934 = vpop.f32.mrb[0].mxu0
        %1935 = vmatprep.mubr.f32.mxu0 %v1787
        %1936 = vmatmul.mubr.f32.gmra.mrb[0].mxu0 %v1786
        %v1937 = vpop.f32.mrb[0].mxu0
        %v1938 = vadd.f32 0.0, %v1937
        %v1939 = vpop.f32.mrb[0].mxu0
        %1940 = vmatprep.mubr.f32.mxu0 %v1790
        %1941 = vmatmul.mubr.f32.gmra.mrb[0].mxu0 %v1789
        %v1942 = vpop.f32.mrb[0].mxu0
        %v1943 = vadd.f32 0.0, %v1942
        %v1944 = vpop.f32.mrb[0].mxu0
        %1945 = vmatprep.mubr.f32.mxu0 %v1793
        %1946 = vmatmul.mubr.f32.gmra.mrb[0].mxu0 %v1792
        %v1947 = vpop.f32.mrb[0].mxu0
        %v1948 = vadd.f32 0.0, %v1947
        %v1949 = vpop.f32.mrb[0].mxu0
        %1950 = vmatprep.mubr.f32.mxu0 %v1796
        %1951 = vmatmul.mubr.f32.gmra.mrb[0].mxu0 %v1795
        %v1952 = vpop.f32.mrb[0].mxu0
        %v1953 = vadd.f32 0.0, %v1952
        %v1954 = vpop.f32.mrb[0].mxu0
        %1955 = vmatprep.mubr.f32.mxu0 %v1799
        %1956 = vmatmul.mubr.f32.gmra.mrb[0].mxu0 %v1798
        %v1957 = vpop.f32.mrb[0].mxu0
        %v1958 = vadd.f32 0.0, %v1957
        %v1959 = vpop.f32.mrb[0].mxu0
        %1960 = vmatprep.mubr.f32.mxu0 %v1802
        %1961 = vmatmul.mubr.f32.gmra.mrb[0].mxu0 %v1801
        %v1962 = vpop.f32.mrb[0].mxu0
        %v1963 = vadd.f32 0.0, %v1962
        %v1964 = vpop.f32.mrb[0].mxu0
        %1965 = vmatprep.mubr.f32.mxu0 %v1805
        %1966 = vmatmul.mubr.f32.gmra.mrb[0].mxu0 %v1804
        %v1967 = vpop.f32.mrb[0].mxu0
        %v1968 = vadd.f32 0.0, %v1967
        %v1969 = vpop.f32.mrb[0].mxu0
        %1970 = vmatprep.mubr.f32.mxu0 %v1808
        %1971 = vmatmul.mubr.f32.gmra.mrb[0].mxu0 %v1807
        %v1972 = vpop.f32.mrb[0].mxu0
        %v1973 = vadd.f32 0.0, %v1972
        %v1974 = vpop.f32.mrb[0].mxu0
        %1975 = vmatprep.mubr.f32.mxu0 %v1811
        %1976 = vmatmul.mubr.f32.gmra.mrb[0].mxu0 %v1810
        %v1977 = vpop.f32.mrb[0].mxu0
        %v1978 = vadd.f32 0.0, %v1977
        %v1979 = vpop.f32.mrb[0].mxu0
        %1980 = vmatprep.mubr.f32.mxu0 %v1814
        %1981 = vmatmul.mubr.f32.gmra.mrb[0].mxu0 %v1813
        %v1982 = vpop.f32.mrb[0].mxu0
        %v1983 = vadd.f32 0.0, %v1982
        %v1984 = vpop.f32.mrb[0].mxu0
        %1985 = vmatprep.mubr.f32.mxu0 %v1817
        %1986 = vmatmul.mubr.f32.gmra.mrb[0].mxu0 %v1816
        %v1987 = vpop.f32.mrb[0].mxu0
        %v1988 = vadd.f32 0.0, %v1987
        %v1989 = vpop.f32.mrb[0].mxu0
        %1990 = vmatprep.mubr.f32.mxu0 %v1820
        %1991 = vmatmul.mubr.f32.gmra.mrb[0].mxu0 %v1819
        %v1992 = vpop.f32.mrb[0].mxu0
        %v1993 = vadd.f32 0.0, %v1992
        %v1994 = vpop.f32.mrb[0].mxu0
        %1995 = vmatprep.mubr.f32.mxu0 %v1823
        %1996 = vmatmul.mubr.f32.gmra.mrb[0].mxu0 %v1822
        %v1997 = vpop.f32.mrb[0].mxu0
        %v1998 = vadd.f32 0.0, %v1997
        %v1999 = vpop.f32.mrb[0].mxu0
        %2000 = vdwg.mxu0
        %v2001 = vld [vmem:[#allocation4] sm:$0x1]
        %v2003 = vlaneseq
        %v2004 = vshrl.u32 %v2003, 7
        %v2005 = vsub.s32 0, %v2004
        %v2006 = vrot.slane %v2001, %v2005
        %2007 = vset.pattern.permute.xlu0 0
        %2008 = vperm.xlu0 %2007, %v2006
        %v2009 = vpop.permute.xlu0 %2008
        %v2011 = vmul.f32 %v2009, %v1923
        %v2012 = vmul.f32 %v2009, %v1928
        %v2013 = vmul.f32 %v2009, %v1933
        %v2014 = vmul.f32 %v2009, %v1938
        %v2015 = vmul.f32 %v2009, %v1943
        %v2016 = vmul.f32 %v2009, %v1948
        %v2017 = vmul.f32 %v2009, %v1953
        %v2018 = vmul.f32 %v2009, %v1958
        %v2019 = vmul.f32 %v2009, %v1963
        %v2020 = vmul.f32 %v2009, %v1968
        %v2021 = vmul.f32 %v2009, %v1973
        %v2022 = vmul.f32 %v2009, %v1978
        %v2023 = vmul.f32 %v2009, %v1983
        %v2024 = vmul.f32 %v2009, %v1988
        %v2025 = vmul.f32 %v2009, %v1993
        %v2026 = vmul.f32 %v2009, %v1998
        %v2027 = vadd.f32 %v2011, %v1021
        %v2028 = vadd.f32 %v2012, %v1022
        %v2029 = vadd.f32 %v2013, %v1023
        %v2030 = vadd.f32 %v2014, %v1024
        %v2031 = vadd.f32 %v2015, %v1025
        %v2032 = vadd.f32 %v2016, %v1026
        %v2033 = vadd.f32 %v2017, %v1027
        %v2034 = vadd.f32 %v2018, %v1028
        %v2035 = vadd.f32 %v2019, %v1029
        %v2036 = vadd.f32 %v2020, %v1030
        %v2037 = vadd.f32 %v2021, %v1031
        %v2038 = vadd.f32 %v2022, %v1032
        %v2039 = vadd.f32 %v2023, %v1033
        %v2040 = vadd.f32 %v2024, %v1034
        %v2041 = vadd.f32 %v2025, %v1035
        %v2042 = vadd.f32 %v2026, %v1036
        %2043 = vst.msk [vmem:[%s339] sm:$0xff] %vm1052, %v2027
        %2044 = vst.msk [vmem:[%s339 + $0x8] sm:$0xff] %vm1052, %v2028
        %2045 = vst.msk [vmem:[%s339 + $0x10] sm:$0xff] %vm1052, %v2029
        %2046 = vst.msk [vmem:[%s339 + $0x18] sm:$0xff] %vm1052, %v2030
        %2047 = vst.msk [vmem:[%s339 + $0x20] sm:$0xff] %vm1052, %v2031
        %2048 = vst.msk [vmem:[%s339 + $0x28] sm:$0xff] %vm1052, %v2032
        %2049 = vst.msk [vmem:[%s339 + $0x30] sm:$0xff] %vm1052, %v2033
        %2050 = vst.msk [vmem:[%s339 + $0x38] sm:$0xff] %vm1052, %v2034
        %2051 = vst.msk [vmem:[%s339 + $0x40] sm:$0xff] %vm1052, %v2035
        %2052 = vst.msk [vmem:[%s339 + $0x48] sm:$0xff] %vm1052, %v2036
        %2053 = vst.msk [vmem:[%s339 + $0x50] sm:$0xff] %vm1052, %v2037
        %2054 = vst.msk [vmem:[%s339 + $0x58] sm:$0xff] %vm1052, %v2038
        %2055 = vst.msk [vmem:[%s339 + $0x60] sm:$0xff] %vm1052, %v2039
        %2056 = vst.msk [vmem:[%s339 + $0x68] sm:$0xff] %vm1052, %v2040
        %2057 = vst.msk [vmem:[%s339 + $0x70] sm:$0xff] %vm1052, %v2041
        %2058 = vst.msk [vmem:[%s339 + $0x78] sm:$0xff] %vm1052, %v2042
        %s2059 = sand.u32 %s222, 1
        %s2060 = scalar_lea.sflag [#allocation7], %s2059
        %s2061 = sand.u32 %s222, 1
        %s2062 = smul.addr %s2061, 128
        %s2063 = scalar_lea.vmem [#allocation8], %s2062
        // Predicated region
        $region61: #{pam_forward.1} parent=51 // pred_check
          %p2064 = pneg %p232
        $region62: #{pam_forward.1} parent=51 // pred_check_branch
          %2066 = sbr.rel (%p2064) target = $region64
        $region63: #{pam_forward.1} parent=51 // pred_region
          %s2067 = smul.u32 16, %s32
          %s2069 = ssub.s32 2048, 2048
          %2070 = vsyncadd %s2060, %s2069
          %s2071 = smul.addr %s31, 32
          %s2072 = sadd.s32 %s2067, %s2071
          %s2073 = smul.addr %s2072, 128
          %s2074 = scalar_lea.hbm %s8, %s2073
          %s2075 = sshll.u32 %s2063, 4
          %s2076 = int_to_ptr.vmem [resolvable:$true] %s2075
          %2081 = dma.vmem_to_hbm [thread:$0]  %s2076, 2048, %s2074, %s2060, 128, 128, 8
        $region64: #{pam_forward.1} parent=51 // pred_fallthru
          _
      $region52: #{pam_forward.1} parent=5 // pred_fallthru
        _
      %p2082 = scmp.le.s32.totalorder 2, %s22
      // Predicated region
      $region65: #{pam_forward.1} parent=5 // pred_check
        %p2083 = pneg %p2082
      $region66: #{pam_forward.1} parent=5 // pred_check_branch
        %2085 = sbr.rel (%p2083) target = $region68
      $region67: #{pam_forward.1} parent=5 // pred_region
        %s2086 = ssub.s32 %s22, 2
        // Predicated region
        $region69: #{pam_forward.1} parent=67 // pred_check
          %p2087 = pneg %p238
        $region70: #{pam_forward.1} parent=67 // pred_check_branch
          %2089 = sbr.rel (%p2087) target = $region72
        $region71: #{pam_forward.1} parent=67 // pred_region
          %s2090 = sand.u32 %s223, 1
          %s2091 = scalar_lea.sflag [#allocation7], %s2090
          %s2092 = sand.u32 %s223, 1
          %s2093 = smul.addr %s2092, 128
          %s2094 = scalar_lea.vmem [#allocation8], %s2093
          %2095 = dma.done %s2091, 2048
        $region72: #{pam_forward.1} parent=67 // pred_fallthru
          _
      $region68: #{pam_forward.1} parent=5 // pred_fallthru
        _
    $region6: #{pam_forward.1} parent=1 // loop_footer
      %s26 = sadd.s32 1, %s22
    $region7: #{pam_forward.1} parent=1 // loop_footer_branch
      %21 = sbr.rel target = $region3
    $region8: #{pam_forward.1} parent=1 // loop_exit
      _
    %2096 = vsyncpa [#allocation6], 1
    %s2097 = scalar_lea.sflag [#allocation6], 1
    %2098 = vsyncpa %s2097, 1
    %2099 = vsyncpa [#allocation7], 1
    %s2100 = scalar_lea.sflag [#allocation7], 1
    %2101 = vsyncpa %s2100, 1

</llo_original>
